<compile_context>
chip_gen: v6e
topology: v6e:2x2x1
jax: 0.10.0
libtpu: 0.0.40
codegen_flags: <defaults>
</compile_context>

<pallas_src>
import functools

import jax
import jax.numpy as jnp
from jax import lax
from jax.experimental import pallas as pl
from jax.experimental.pallas import tpu as pltpu

H, W, CIN = 7, 7, 3          # minigrid 7x7x3 image -> embedding_size 64
ROW_STRIDE = 32              # per-image-row lane stride (W*CIN=21 padded to 32)
FLAT_W = H * ROW_STRIDE      # 224 lanes per sample


# ----------------------------------------------------------------------------
# Fused Pallas kernel: whole ACModel forward for one batch tile of TB samples
# ----------------------------------------------------------------------------
def _acmodel_kernel(x_ref, c1w_ref, c1b_ref, c2w_ref, c2b_ref, c3w_ref, c3b_ref,
                    hw1_ref, hb1_ref, hw2_ref, hb2_ref, out_ref, *, n_actions):
    f32 = jnp.float32
    TB = x_ref.shape[0]
    x = x_ref[...]                                            # [TB, 224]

    # ---- Conv1 (3->16, 2x2) + ReLU : 7x7 -> 6x6  (in-register im2col) -------
    patches1 = []
    for oh in range(6):
        for ow in range(6):
            top = x[:, oh * ROW_STRIDE + ow * CIN: oh * ROW_STRIDE + ow * CIN + 2 * CIN]
            bot = x[:, (oh + 1) * ROW_STRIDE + ow * CIN:
                       (oh + 1) * ROW_STRIDE + ow * CIN + 2 * CIN]
            patches1.append(jnp.concatenate([top, bot], axis=1))        # [TB, 12]
    p1 = jnp.concatenate(patches1, axis=0)                              # [36*TB, 12]
    y1 = jnp.maximum(
        jnp.dot(p1, c1w_ref[...], preferred_element_type=f32) + c1b_ref[...], 0.0)
    y1s = [y1[i * TB:(i + 1) * TB, :] for i in range(36)]               # (oh,ow) row-major

    # ---- MaxPool2d(2x2, stride 2) : 6x6 -> 3x3 -------------------------------
    pooled = []
    for ph in range(3):
        for pw in range(3):
            a = y1s[(2 * ph) * 6 + 2 * pw]
            b = y1s[(2 * ph) * 6 + 2 * pw + 1]
            c = y1s[(2 * ph + 1) * 6 + 2 * pw]
            d = y1s[(2 * ph + 1) * 6 + 2 * pw + 1]
            pooled.append(jnp.maximum(jnp.maximum(a, b), jnp.maximum(c, d)))  # [TB, 16]

    # ---- Conv2 (16->32, 2x2) + ReLU : 3x3 -> 2x2 -----------------------------
    patches2 = []
    for oh in range(2):
        for ow in range(2):
            patches2.append(jnp.concatenate(
                [pooled[oh * 3 + ow], pooled[oh * 3 + ow + 1],
                 pooled[(oh + 1) * 3 + ow], pooled[(oh + 1) * 3 + ow + 1]], axis=1))
    p2 = jnp.concatenate(patches2, axis=0)                              # [4*TB, 64]
    y2 = jnp.maximum(
        jnp.dot(p2, c2w_ref[...], preferred_element_type=f32) + c2b_ref[...], 0.0)
    y2s = [y2[i * TB:(i + 1) * TB, :] for i in range(4)]

    # ---- Conv3 (32->64, 2x2) + ReLU : 2x2 -> 1x1  => embedding [TB, 64] ------
    p3 = jnp.concatenate([y2s[0], y2s[1], y2s[2], y2s[3]], axis=1)      # [TB, 128]
    emb = jnp.maximum(
        jnp.dot(p3, c3w_ref[...], preferred_element_type=f32) + c3b_ref[...], 0.0)

    # ---- Fused actor/critic heads --------------------------------------------
    # hw1 = [actor_w1 | critic_w1] : [64, 128];  hw2 block-diag padded to [128, 128]
    h = jnp.tanh(jnp.dot(emb, hw1_ref[...], preferred_element_type=f32) + hb1_ref[...])
    out = jnp.dot(h, hw2_ref[...], preferred_element_type=f32) + hb2_ref[...]  # [TB,128]
    # cols [0, A) = actor logits, col A = critic value, remaining cols = 0

    A = n_actions
    lane = lax.broadcasted_iota(jnp.int32, out.shape, 1)
    logits = jnp.where(lane < A, out, -jnp.inf)
    m = jnp.max(logits, axis=1, keepdims=True)
    z = logits - m
    lse = jnp.log(jnp.sum(jnp.exp(z), axis=1, keepdims=True))
    logp = z - lse                                                     # stable log_softmax

    res = jnp.where(lane < A, logp, 0.0)
    res = jnp.where(lane == A, out[:, A:A + 1], res)
    out_ref[...] = res                                                 # one lane-dense store


# ----------------------------------------------------------------------------
# Wrapper: batch padding/tiling, fused head-weight construction, pallas_call
# ----------------------------------------------------------------------------
def ac_model_forward(obs_image, p, *, tile_b=8):
    """obs_image: [B, 7, 7, 3] float32 (obs.image layout).

    Returns (log_probs [B, n_actions], value [B]) -- log_probs are the normalized
    logits of the Categorical distribution in the reference model.
    """
    B = obs_image.shape[0]
    A = p["actor_w2"].shape[1]
    Bp = ((B + tile_b - 1) // tile_b) * tile_b
    n_tiles = Bp // tile_b

    # Flatten image rows with a 32-lane stride so in-kernel patch slices stay tile-local.
    x = obs_image.astype(jnp.float32).reshape(B, H, W * CIN)
    x = jnp.pad(x, ((0, Bp - B), (0, 0), (0, ROW_STRIDE - W * CIN)))
    x = x.reshape(Bp, FLAT_W)

    # Fused head weights: [64,128] first layer, block-diagonal [128,128] second layer.
    hw1 = jnp.concatenate([p["actor_w1"], p["critic_w1"]], axis=1)               # [64,128]
    hb1 = jnp.concatenate([p["actor_b1"], p["critic_b1"]], axis=0).reshape(1, 128)
    hw2 = jnp.zeros((128, 128), jnp.float32)
    hw2 = hw2.at[:64, :A].set(p["actor_w2"])
    hw2 = hw2.at[64:, A:A + 1].set(p["critic_w2"])
    hb2 = jnp.zeros((1, 128), jnp.float32)
    hb2 = hb2.at[0, :A].set(p["actor_b2"])
    hb2 = hb2.at[0, A].set(p["critic_b2"][0])

    c1b = p["conv1_b"].reshape(1, -1)
    c2b = p["conv2_b"].reshape(1, -1)
    c3b = p["conv3_b"].reshape(1, -1)

    def wspec(arr):
        shape = arr.shape
        return pl.BlockSpec(shape, lambda i, _s=shape: tuple(0 for _ in _s))

    flops_per_sample = 2 * (36 * 12 * 16 + 4 * 64 * 32 + 128 * 64 + 64 * 128 + 128 * 128)
    trans_per_sample = 128 + 128 + 1
    weight_elems = (12 * 16 + 16 + 64 * 32 + 32 + 128 * 64 + 64
                    + 64 * 128 + 128 + 128 * 128 + 128)
    cost = pl.CostEstimate(
        flops=flops_per_sample * Bp,
        transcendentals=trans_per_sample * Bp,
        bytes_accessed=Bp * (FLAT_W + 128) * 4 + weight_elems * 4 * n_tiles,
    )

    kern = functools.partial(_acmodel_kernel, n_actions=A)
    out = pl.pallas_call(
        kern,
        out_shape=jax.ShapeDtypeStruct((Bp, 128), jnp.float32),
        grid=(n_tiles,),
        in_specs=[
            pl.BlockSpec((tile_b, FLAT_W), lambda i: (i, 0)),
            wspec(p["conv1_w"]), wspec(c1b),
            wspec(p["conv2_w"]), wspec(c2b),
            wspec(p["conv3_w"]), wspec(c3b),
            wspec(hw1), wspec(hb1),
            wspec(hw2), wspec(hb2),
        ],
        out_specs=pl.BlockSpec((tile_b, 128), lambda i: (i, 0)),
        compiler_params=pltpu.CompilerParams(dimension_semantics=("parallel",)),
        cost_estimate=cost,
    )(x, p["conv1_w"], c1b, p["conv2_w"], c2b, p["conv3_w"], c3b, hw1, hb1, hw2, hb2)

    return out[:B, :A], out[:B, A]


# ----------------------------------------------------------------------------
# Pure-JAX reference (independent of the kernel's slicing/fusion logic)
# ----------------------------------------------------------------------------
def _reference_forward(obs_image, p):
    B = obs_image.shape[0]

    def conv2x2(xx, w, b):
        _, Hh, Wh, Cin = xx.shape
        Cout = w.shape[1]
        w4 = w.reshape(2, 2, Cin, Cout)
        y = jnp.zeros((B, Hh - 1, Wh - 1, Cout), jnp.float32)
        for ki in range(2):
            for kj in range(2):
                y = y + jnp.einsum("bhwc,cd->bhwd",
                                   xx[:, ki:ki + Hh - 1, kj:kj + Wh - 1, :], w4[ki, kj],
                                   precision=lax.Precision.HIGHEST)
        return jax.nn.relu(y + b)

    y1 = conv2x2(obs_image.astype(jnp.float32), p["conv1_w"], p["conv1_b"])
    y1p = jnp.max(y1.reshape(B, 3, 2, 3, 2, 16), axis=(2, 4))
    y2 = conv2x2(y1p, p["conv2_w"], p["conv2_b"])
    y3 = conv2x2(y2, p["conv3_w"], p["conv3_b"])
    emb = y3.reshape(B, 64)

    hp = lax.Precision.HIGHEST
    ha = jnp.tanh(jnp.dot(emb, p["actor_w1"], precision=hp) + p["actor_b1"])
    logits = jnp.dot(ha, p["actor_w2"], precision=hp) + p["actor_b2"]
    logp = jax.nn.log_softmax(logits, axis=1)
    hc = jnp.tanh(jnp.dot(emb, p["critic_w1"], precision=hp) + p["critic_b1"])
    value = (jnp.dot(hc, p["critic_w2"], precision=hp) + p["critic_b2"])[:, 0]
    return logp, value


# ----------------------------------------------------------------------------
# Deterministic synthetic parameters (shapes mirror the PyTorch module)
# ----------------------------------------------------------------------------
def make_params(key, n_actions):
    ks = jax.random.split(key, 12)

    def conv_params(kw, kb, cin, cout):
        # stored pre-flattened for im2col: [2*2*cin, cout], (ki,kj,cin)-major row order
        w = 0.1 * jax.random.normal(kw, (4 * cin, cout), jnp.float32)
        b = 0.01 * jax.random.normal(kb, (cout,), jnp.float32)
        return w, b

    def linear_params(kw, fan_in, fan_out):
        # mimics init_params: normal(0,1) rows normalized over the input dim, bias = 0
        w = jax.random.normal(kw, (fan_in, fan_out), jnp.float32)
        w = w / jnp.sqrt(jnp.sum(w * w, axis=0, keepdims=True))
        b = jnp.zeros((fan_out,), jnp.float32)
        return w, b

    c1w, c1b = conv_params(ks[0], ks[1], 3, 16)
    c2w, c2b = conv_params(ks[2], ks[3], 16, 32)
    c3w, c3b = conv_params(ks[4], ks[5], 32, 64)
    aw1, ab1 = linear_params(ks[6], 64, 64)
    aw2, ab2 = linear_params(ks[7], 64, n_actions)
    cw1, cb1 = linear_params(ks[8], 64, 64)
    cw2, cb2 = linear_params(ks[9], 64, 1)

    return dict(
        conv1_w=c1w, conv1_b=c1b,
        conv2_w=c2w, conv2_b=c2b,
        conv3_w=c3w, conv3_b=c3b,
        actor_w1=aw1, actor_b1=ab1,
        actor_w2=aw2, actor_b2=ab2,
        critic_w1=cw1, critic_b1=cb1,
        critic_w2=cw2, critic_b2=cb2,
    )


# ----------------------------------------------------------------------------
if __name__ == "__main__":
    key = jax.random.PRNGKey(0)
    k_params, k_obs = jax.random.split(key)

    n_actions = 7
    batch = 2
    params = make_params(k_params, n_actions)

    # obs.image: [B, H, W, C] = [2, 7, 7, 3]  (7x7x3 is what makes embedding_size == 64)
    obs_image = jax.random.uniform(k_obs, (batch, 7, 7, 3), dtype=jnp.float32)

    fwd = jax.jit(ac_model_forward)
    log_probs, value = fwd(obs_image, params)
    jax.block_until_ready((log_probs, value))

    assert log_probs.shape == (batch, n_actions)
    assert value.shape == (batch,)
    # log_softmax rows must (approximately) sum to 1 in prob space
    assert jnp.allclose(jnp.sum(jnp.exp(log_probs), axis=1), 1.0, atol=1e-4)

    # cross-check against an independent pure-JAX reference
    ref_logp, ref_val = _reference_forward(obs_image, params)
    assert jnp.allclose(log_probs, ref_logp, atol=2e-2, rtol=2e-2)
    assert jnp.allclose(value, ref_val, atol=2e-2, rtol=2e-2)

    # TODO(synk): torch.distributions.Categorical has no Pallas equivalent; the kernel
    # returns its normalized logits (log-probs) instead of a distribution object.
    print("KERNEL_OK")
</pallas_src>

<mosaic_0001>
module attributes {stable_mosaic.version = 11 : i64} {
  func.func @_acmodel_kernel(%arg0: i32, %arg1: memref<8x224xf32, #tpu.memory_space<vmem>>, %arg2: memref<12x16xf32, #tpu.memory_space<vmem>>, %arg3: memref<1x16xf32, #tpu.memory_space<vmem>>, %arg4: memref<64x32xf32, #tpu.memory_space<vmem>>, %arg5: memref<1x32xf32, #tpu.memory_space<vmem>>, %arg6: memref<128x64xf32, #tpu.memory_space<vmem>>, %arg7: memref<1x64xf32, #tpu.memory_space<vmem>>, %arg8: memref<64x128xf32, #tpu.memory_space<vmem>>, %arg9: memref<1x128xf32, #tpu.memory_space<vmem>>, %arg10: memref<128x128xf32, #tpu.memory_space<vmem>>, %arg11: memref<1x128xf32, #tpu.memory_space<vmem>>, %arg12: memref<8x128xf32, #tpu.memory_space<vmem>>) attributes {dimension_semantics = [#tpu.dimension_semantics<parallel>], iteration_bounds = array<i64: 1>, scalar_prefetch = 0 : i64, scratch_operands = 0 : i64, tpu.core_type = #tpu.core_type<tc>, window_params = [{transform_indices = @transform_0, window_bounds = array<i64: 8, 224>}, {pipeline_mode = #tpu.pipeline_mode<synchronous>, transform_indices = @transform_1, window_bounds = array<i64: 12, 16>}, {pipeline_mode = #tpu.pipeline_mode<synchronous>, transform_indices = @transform_2, window_bounds = array<i64: 1, 16>}, {pipeline_mode = #tpu.pipeline_mode<synchronous>, transform_indices = @transform_3, window_bounds = array<i64: 64, 32>}, {pipeline_mode = #tpu.pipeline_mode<synchronous>, transform_indices = @transform_4, window_bounds = array<i64: 1, 32>}, {pipeline_mode = #tpu.pipeline_mode<synchronous>, transform_indices = @transform_5, window_bounds = array<i64: 128, 64>}, {pipeline_mode = #tpu.pipeline_mode<synchronous>, transform_indices = @transform_6, window_bounds = array<i64: 1, 64>}, {pipeline_mode = #tpu.pipeline_mode<synchronous>, transform_indices = @transform_7, window_bounds = array<i64: 64, 128>}, {pipeline_mode = #tpu.pipeline_mode<synchronous>, transform_indices = @transform_8, window_bounds = array<i64: 1, 128>}, {pipeline_mode = #tpu.pipeline_mode<synchronous>, transform_indices = @transform_9, window_bounds = array<i64: 128, 128>}, {pipeline_mode = #tpu.pipeline_mode<synchronous>, transform_indices = @transform_10, window_bounds = array<i64: 1, 128>}, {transform_indices = @transform_11, window_bounds = array<i64: 8, 128>}]} {
    %c0 = arith.constant 0 : index
    %c0_0 = arith.constant 0 : index
    %0 = vector.load %arg1[%c0, %c0_0] : memref<8x224xf32, #tpu.memory_space<vmem>>, vector<8x224xf32>
    %1 = vector.extract_strided_slice %0 {offsets = [0, 0], sizes = [8, 6], strides = [1, 1]} : vector<8x224xf32> to vector<8x6xf32>
    %2 = vector.extract_strided_slice %0 {offsets = [0, 32], sizes = [8, 6], strides = [1, 1]} : vector<8x224xf32> to vector<8x6xf32>
    %3 = tpu.concatenate %1, %2 in 1 : vector<8x6xf32>, vector<8x6xf32> -> vector<8x12xf32>
    %4 = vector.extract_strided_slice %0 {offsets = [0, 3], sizes = [8, 6], strides = [1, 1]} : vector<8x224xf32> to vector<8x6xf32>
    %5 = vector.extract_strided_slice %0 {offsets = [0, 35], sizes = [8, 6], strides = [1, 1]} : vector<8x224xf32> to vector<8x6xf32>
    %6 = tpu.concatenate %4, %5 in 1 : vector<8x6xf32>, vector<8x6xf32> -> vector<8x12xf32>
    %7 = vector.extract_strided_slice %0 {offsets = [0, 6], sizes = [8, 6], strides = [1, 1]} : vector<8x224xf32> to vector<8x6xf32>
    %8 = vector.extract_strided_slice %0 {offsets = [0, 38], sizes = [8, 6], strides = [1, 1]} : vector<8x224xf32> to vector<8x6xf32>
    %9 = tpu.concatenate %7, %8 in 1 : vector<8x6xf32>, vector<8x6xf32> -> vector<8x12xf32>
    %10 = vector.extract_strided_slice %0 {offsets = [0, 9], sizes = [8, 6], strides = [1, 1]} : vector<8x224xf32> to vector<8x6xf32>
    %11 = vector.extract_strided_slice %0 {offsets = [0, 41], sizes = [8, 6], strides = [1, 1]} : vector<8x224xf32> to vector<8x6xf32>
    %12 = tpu.concatenate %10, %11 in 1 : vector<8x6xf32>, vector<8x6xf32> -> vector<8x12xf32>
    %13 = vector.extract_strided_slice %0 {offsets = [0, 12], sizes = [8, 6], strides = [1, 1]} : vector<8x224xf32> to vector<8x6xf32>
    %14 = vector.extract_strided_slice %0 {offsets = [0, 44], sizes = [8, 6], strides = [1, 1]} : vector<8x224xf32> to vector<8x6xf32>
    %15 = tpu.concatenate %13, %14 in 1 : vector<8x6xf32>, vector<8x6xf32> -> vector<8x12xf32>
    %16 = vector.extract_strided_slice %0 {offsets = [0, 15], sizes = [8, 6], strides = [1, 1]} : vector<8x224xf32> to vector<8x6xf32>
    %17 = vector.extract_strided_slice %0 {offsets = [0, 47], sizes = [8, 6], strides = [1, 1]} : vector<8x224xf32> to vector<8x6xf32>
    %18 = tpu.concatenate %16, %17 in 1 : vector<8x6xf32>, vector<8x6xf32> -> vector<8x12xf32>
    %19 = vector.extract_strided_slice %0 {offsets = [0, 32], sizes = [8, 6], strides = [1, 1]} : vector<8x224xf32> to vector<8x6xf32>
    %20 = vector.extract_strided_slice %0 {offsets = [0, 64], sizes = [8, 6], strides = [1, 1]} : vector<8x224xf32> to vector<8x6xf32>
    %21 = tpu.concatenate %19, %20 in 1 : vector<8x6xf32>, vector<8x6xf32> -> vector<8x12xf32>
    %22 = vector.extract_strided_slice %0 {offsets = [0, 35], sizes = [8, 6], strides = [1, 1]} : vector<8x224xf32> to vector<8x6xf32>
    %23 = vector.extract_strided_slice %0 {offsets = [0, 67], sizes = [8, 6], strides = [1, 1]} : vector<8x224xf32> to vector<8x6xf32>
    %24 = tpu.concatenate %22, %23 in 1 : vector<8x6xf32>, vector<8x6xf32> -> vector<8x12xf32>
    %25 = vector.extract_strided_slice %0 {offsets = [0, 38], sizes = [8, 6], strides = [1, 1]} : vector<8x224xf32> to vector<8x6xf32>
    %26 = vector.extract_strided_slice %0 {offsets = [0, 70], sizes = [8, 6], strides = [1, 1]} : vector<8x224xf32> to vector<8x6xf32>
    %27 = tpu.concatenate %25, %26 in 1 : vector<8x6xf32>, vector<8x6xf32> -> vector<8x12xf32>
    %28 = vector.extract_strided_slice %0 {offsets = [0, 41], sizes = [8, 6], strides = [1, 1]} : vector<8x224xf32> to vector<8x6xf32>
    %29 = vector.extract_strided_slice %0 {offsets = [0, 73], sizes = [8, 6], strides = [1, 1]} : vector<8x224xf32> to vector<8x6xf32>
    %30 = tpu.concatenate %28, %29 in 1 : vector<8x6xf32>, vector<8x6xf32> -> vector<8x12xf32>
    %31 = vector.extract_strided_slice %0 {offsets = [0, 44], sizes = [8, 6], strides = [1, 1]} : vector<8x224xf32> to vector<8x6xf32>
    %32 = vector.extract_strided_slice %0 {offsets = [0, 76], sizes = [8, 6], strides = [1, 1]} : vector<8x224xf32> to vector<8x6xf32>
    %33 = tpu.concatenate %31, %32 in 1 : vector<8x6xf32>, vector<8x6xf32> -> vector<8x12xf32>
    %34 = vector.extract_strided_slice %0 {offsets = [0, 47], sizes = [8, 6], strides = [1, 1]} : vector<8x224xf32> to vector<8x6xf32>
    %35 = vector.extract_strided_slice %0 {offsets = [0, 79], sizes = [8, 6], strides = [1, 1]} : vector<8x224xf32> to vector<8x6xf32>
    %36 = tpu.concatenate %34, %35 in 1 : vector<8x6xf32>, vector<8x6xf32> -> vector<8x12xf32>
    %37 = vector.extract_strided_slice %0 {offsets = [0, 64], sizes = [8, 6], strides = [1, 1]} : vector<8x224xf32> to vector<8x6xf32>
    %38 = vector.extract_strided_slice %0 {offsets = [0, 96], sizes = [8, 6], strides = [1, 1]} : vector<8x224xf32> to vector<8x6xf32>
    %39 = tpu.concatenate %37, %38 in 1 : vector<8x6xf32>, vector<8x6xf32> -> vector<8x12xf32>
    %40 = vector.extract_strided_slice %0 {offsets = [0, 67], sizes = [8, 6], strides = [1, 1]} : vector<8x224xf32> to vector<8x6xf32>
    %41 = vector.extract_strided_slice %0 {offsets = [0, 99], sizes = [8, 6], strides = [1, 1]} : vector<8x224xf32> to vector<8x6xf32>
    %42 = tpu.concatenate %40, %41 in 1 : vector<8x6xf32>, vector<8x6xf32> -> vector<8x12xf32>
    %43 = vector.extract_strided_slice %0 {offsets = [0, 70], sizes = [8, 6], strides = [1, 1]} : vector<8x224xf32> to vector<8x6xf32>
    %44 = vector.extract_strided_slice %0 {offsets = [0, 102], sizes = [8, 6], strides = [1, 1]} : vector<8x224xf32> to vector<8x6xf32>
    %45 = tpu.concatenate %43, %44 in 1 : vector<8x6xf32>, vector<8x6xf32> -> vector<8x12xf32>
    %46 = vector.extract_strided_slice %0 {offsets = [0, 73], sizes = [8, 6], strides = [1, 1]} : vector<8x224xf32> to vector<8x6xf32>
    %47 = vector.extract_strided_slice %0 {offsets = [0, 105], sizes = [8, 6], strides = [1, 1]} : vector<8x224xf32> to vector<8x6xf32>
    %48 = tpu.concatenate %46, %47 in 1 : vector<8x6xf32>, vector<8x6xf32> -> vector<8x12xf32>
    %49 = vector.extract_strided_slice %0 {offsets = [0, 76], sizes = [8, 6], strides = [1, 1]} : vector<8x224xf32> to vector<8x6xf32>
    %50 = vector.extract_strided_slice %0 {offsets = [0, 108], sizes = [8, 6], strides = [1, 1]} : vector<8x224xf32> to vector<8x6xf32>
    %51 = tpu.concatenate %49, %50 in 1 : vector<8x6xf32>, vector<8x6xf32> -> vector<8x12xf32>
    %52 = vector.extract_strided_slice %0 {offsets = [0, 79], sizes = [8, 6], strides = [1, 1]} : vector<8x224xf32> to vector<8x6xf32>
    %53 = vector.extract_strided_slice %0 {offsets = [0, 111], sizes = [8, 6], strides = [1, 1]} : vector<8x224xf32> to vector<8x6xf32>
    %54 = tpu.concatenate %52, %53 in 1 : vector<8x6xf32>, vector<8x6xf32> -> vector<8x12xf32>
    %55 = vector.extract_strided_slice %0 {offsets = [0, 96], sizes = [8, 6], strides = [1, 1]} : vector<8x224xf32> to vector<8x6xf32>
    %56 = vector.extract_strided_slice %0 {offsets = [0, 128], sizes = [8, 6], strides = [1, 1]} : vector<8x224xf32> to vector<8x6xf32>
    %57 = tpu.concatenate %55, %56 in 1 : vector<8x6xf32>, vector<8x6xf32> -> vector<8x12xf32>
    %58 = vector.extract_strided_slice %0 {offsets = [0, 99], sizes = [8, 6], strides = [1, 1]} : vector<8x224xf32> to vector<8x6xf32>
    %59 = vector.extract_strided_slice %0 {offsets = [0, 131], sizes = [8, 6], strides = [1, 1]} : vector<8x224xf32> to vector<8x6xf32>
    %60 = tpu.concatenate %58, %59 in 1 : vector<8x6xf32>, vector<8x6xf32> -> vector<8x12xf32>
    %61 = vector.extract_strided_slice %0 {offsets = [0, 102], sizes = [8, 6], strides = [1, 1]} : vector<8x224xf32> to vector<8x6xf32>
    %62 = vector.extract_strided_slice %0 {offsets = [0, 134], sizes = [8, 6], strides = [1, 1]} : vector<8x224xf32> to vector<8x6xf32>
    %63 = tpu.concatenate %61, %62 in 1 : vector<8x6xf32>, vector<8x6xf32> -> vector<8x12xf32>
    %64 = vector.extract_strided_slice %0 {offsets = [0, 105], sizes = [8, 6], strides = [1, 1]} : vector<8x224xf32> to vector<8x6xf32>
    %65 = vector.extract_strided_slice %0 {offsets = [0, 137], sizes = [8, 6], strides = [1, 1]} : vector<8x224xf32> to vector<8x6xf32>
    %66 = tpu.concatenate %64, %65 in 1 : vector<8x6xf32>, vector<8x6xf32> -> vector<8x12xf32>
    %67 = vector.extract_strided_slice %0 {offsets = [0, 108], sizes = [8, 6], strides = [1, 1]} : vector<8x224xf32> to vector<8x6xf32>
    %68 = vector.extract_strided_slice %0 {offsets = [0, 140], sizes = [8, 6], strides = [1, 1]} : vector<8x224xf32> to vector<8x6xf32>
    %69 = tpu.concatenate %67, %68 in 1 : vector<8x6xf32>, vector<8x6xf32> -> vector<8x12xf32>
    %70 = vector.extract_strided_slice %0 {offsets = [0, 111], sizes = [8, 6], strides = [1, 1]} : vector<8x224xf32> to vector<8x6xf32>
    %71 = vector.extract_strided_slice %0 {offsets = [0, 143], sizes = [8, 6], strides = [1, 1]} : vector<8x224xf32> to vector<8x6xf32>
    %72 = tpu.concatenate %70, %71 in 1 : vector<8x6xf32>, vector<8x6xf32> -> vector<8x12xf32>
    %73 = vector.extract_strided_slice %0 {offsets = [0, 128], sizes = [8, 6], strides = [1, 1]} : vector<8x224xf32> to vector<8x6xf32>
    %74 = vector.extract_strided_slice %0 {offsets = [0, 160], sizes = [8, 6], strides = [1, 1]} : vector<8x224xf32> to vector<8x6xf32>
    %75 = tpu.concatenate %73, %74 in 1 : vector<8x6xf32>, vector<8x6xf32> -> vector<8x12xf32>
    %76 = vector.extract_strided_slice %0 {offsets = [0, 131], sizes = [8, 6], strides = [1, 1]} : vector<8x224xf32> to vector<8x6xf32>
    %77 = vector.extract_strided_slice %0 {offsets = [0, 163], sizes = [8, 6], strides = [1, 1]} : vector<8x224xf32> to vector<8x6xf32>
    %78 = tpu.concatenate %76, %77 in 1 : vector<8x6xf32>, vector<8x6xf32> -> vector<8x12xf32>
    %79 = vector.extract_strided_slice %0 {offsets = [0, 134], sizes = [8, 6], strides = [1, 1]} : vector<8x224xf32> to vector<8x6xf32>
    %80 = vector.extract_strided_slice %0 {offsets = [0, 166], sizes = [8, 6], strides = [1, 1]} : vector<8x224xf32> to vector<8x6xf32>
    %81 = tpu.concatenate %79, %80 in 1 : vector<8x6xf32>, vector<8x6xf32> -> vector<8x12xf32>
    %82 = vector.extract_strided_slice %0 {offsets = [0, 137], sizes = [8, 6], strides = [1, 1]} : vector<8x224xf32> to vector<8x6xf32>
    %83 = vector.extract_strided_slice %0 {offsets = [0, 169], sizes = [8, 6], strides = [1, 1]} : vector<8x224xf32> to vector<8x6xf32>
    %84 = tpu.concatenate %82, %83 in 1 : vector<8x6xf32>, vector<8x6xf32> -> vector<8x12xf32>
    %85 = vector.extract_strided_slice %0 {offsets = [0, 140], sizes = [8, 6], strides = [1, 1]} : vector<8x224xf32> to vector<8x6xf32>
    %86 = vector.extract_strided_slice %0 {offsets = [0, 172], sizes = [8, 6], strides = [1, 1]} : vector<8x224xf32> to vector<8x6xf32>
    %87 = tpu.concatenate %85, %86 in 1 : vector<8x6xf32>, vector<8x6xf32> -> vector<8x12xf32>
    %88 = vector.extract_strided_slice %0 {offsets = [0, 143], sizes = [8, 6], strides = [1, 1]} : vector<8x224xf32> to vector<8x6xf32>
    %89 = vector.extract_strided_slice %0 {offsets = [0, 175], sizes = [8, 6], strides = [1, 1]} : vector<8x224xf32> to vector<8x6xf32>
    %90 = tpu.concatenate %88, %89 in 1 : vector<8x6xf32>, vector<8x6xf32> -> vector<8x12xf32>
    %91 = vector.extract_strided_slice %0 {offsets = [0, 160], sizes = [8, 6], strides = [1, 1]} : vector<8x224xf32> to vector<8x6xf32>
    %92 = vector.extract_strided_slice %0 {offsets = [0, 192], sizes = [8, 6], strides = [1, 1]} : vector<8x224xf32> to vector<8x6xf32>
    %93 = tpu.concatenate %91, %92 in 1 : vector<8x6xf32>, vector<8x6xf32> -> vector<8x12xf32>
    %94 = vector.extract_strided_slice %0 {offsets = [0, 163], sizes = [8, 6], strides = [1, 1]} : vector<8x224xf32> to vector<8x6xf32>
    %95 = vector.extract_strided_slice %0 {offsets = [0, 195], sizes = [8, 6], strides = [1, 1]} : vector<8x224xf32> to vector<8x6xf32>
    %96 = tpu.concatenate %94, %95 in 1 : vector<8x6xf32>, vector<8x6xf32> -> vector<8x12xf32>
    %97 = vector.extract_strided_slice %0 {offsets = [0, 166], sizes = [8, 6], strides = [1, 1]} : vector<8x224xf32> to vector<8x6xf32>
    %98 = vector.extract_strided_slice %0 {offsets = [0, 198], sizes = [8, 6], strides = [1, 1]} : vector<8x224xf32> to vector<8x6xf32>
    %99 = tpu.concatenate %97, %98 in 1 : vector<8x6xf32>, vector<8x6xf32> -> vector<8x12xf32>
    %100 = vector.extract_strided_slice %0 {offsets = [0, 169], sizes = [8, 6], strides = [1, 1]} : vector<8x224xf32> to vector<8x6xf32>
    %101 = vector.extract_strided_slice %0 {offsets = [0, 201], sizes = [8, 6], strides = [1, 1]} : vector<8x224xf32> to vector<8x6xf32>
    %102 = tpu.concatenate %100, %101 in 1 : vector<8x6xf32>, vector<8x6xf32> -> vector<8x12xf32>
    %103 = vector.extract_strided_slice %0 {offsets = [0, 172], sizes = [8, 6], strides = [1, 1]} : vector<8x224xf32> to vector<8x6xf32>
    %104 = vector.extract_strided_slice %0 {offsets = [0, 204], sizes = [8, 6], strides = [1, 1]} : vector<8x224xf32> to vector<8x6xf32>
    %105 = tpu.concatenate %103, %104 in 1 : vector<8x6xf32>, vector<8x6xf32> -> vector<8x12xf32>
    %106 = vector.extract_strided_slice %0 {offsets = [0, 175], sizes = [8, 6], strides = [1, 1]} : vector<8x224xf32> to vector<8x6xf32>
    %107 = vector.extract_strided_slice %0 {offsets = [0, 207], sizes = [8, 6], strides = [1, 1]} : vector<8x224xf32> to vector<8x6xf32>
    %108 = tpu.concatenate %106, %107 in 1 : vector<8x6xf32>, vector<8x6xf32> -> vector<8x12xf32>
    %109 = tpu.concatenate %3, %6, %9, %12, %15, %18, %21, %24, %27, %30, %33, %36, %39, %42, %45, %48 in 0 : vector<8x12xf32>, vector<8x12xf32>, vector<8x12xf32>, vector<8x12xf32>, vector<8x12xf32>, vector<8x12xf32>, vector<8x12xf32>, vector<8x12xf32>, vector<8x12xf32>, vector<8x12xf32>, vector<8x12xf32>, vector<8x12xf32>, vector<8x12xf32>, vector<8x12xf32>, vector<8x12xf32>, vector<8x12xf32> -> vector<128x12xf32>
    %110 = tpu.concatenate %51, %54, %57, %60, %63, %66, %69, %72, %75, %78, %81, %84, %87, %90, %93, %96 in 0 : vector<8x12xf32>, vector<8x12xf32>, vector<8x12xf32>, vector<8x12xf32>, vector<8x12xf32>, vector<8x12xf32>, vector<8x12xf32>, vector<8x12xf32>, vector<8x12xf32>, vector<8x12xf32>, vector<8x12xf32>, vector<8x12xf32>, vector<8x12xf32>, vector<8x12xf32>, vector<8x12xf32>, vector<8x12xf32> -> vector<128x12xf32>
    %111 = tpu.concatenate %99, %102, %105, %108 in 0 : vector<8x12xf32>, vector<8x12xf32>, vector<8x12xf32>, vector<8x12xf32> -> vector<32x12xf32>
    %112 = tpu.concatenate %109, %110, %111 in 0 : vector<128x12xf32>, vector<128x12xf32>, vector<32x12xf32> -> vector<288x12xf32>
    %c0_1 = arith.constant 0 : index
    %c0_2 = arith.constant 0 : index
    %113 = vector.load %arg2[%c0_1, %c0_2] : memref<12x16xf32, #tpu.memory_space<vmem>>, vector<12x16xf32>
    %cst = arith.constant dense<0.000000e+00> : vector<288x16xf32>
    %114 = tpu.matmul %112, %113, %cst {dimension_numbers = #tpu.dot_dimension_numbers<[1], [0], [0], [1], [0, 0, 1, 1], [], []>} : vector<288x12xf32>, vector<12x16xf32>, vector<288x16xf32> -> vector<288x16xf32>
    %c0_3 = arith.constant 0 : index
    %c0_4 = arith.constant 0 : index
    %115 = vector.load %arg3[%c0_3, %c0_4] : memref<1x16xf32, #tpu.memory_space<vmem>>, vector<1x16xf32>
    %116 = vector.broadcast %115 : vector<1x16xf32> to vector<288x16xf32>
    %117 = arith.addf %114, %116 : vector<288x16xf32>
    %cst_5 = arith.constant 0.000000e+00 : f32
    %118 = vector.broadcast %cst_5 : f32 to vector<288x16xf32>
    %119 = arith.maximumf %117, %118 : vector<288x16xf32>
    %120 = vector.extract_strided_slice %119 {offsets = [0, 0], sizes = [8, 16], strides = [1, 1]} : vector<288x16xf32> to vector<8x16xf32>
    %121 = vector.extract_strided_slice %119 {offsets = [8, 0], sizes = [8, 16], strides = [1, 1]} : vector<288x16xf32> to vector<8x16xf32>
    %122 = vector.extract_strided_slice %119 {offsets = [16, 0], sizes = [8, 16], strides = [1, 1]} : vector<288x16xf32> to vector<8x16xf32>
    %123 = vector.extract_strided_slice %119 {offsets = [24, 0], sizes = [8, 16], strides = [1, 1]} : vector<288x16xf32> to vector<8x16xf32>
    %124 = vector.extract_strided_slice %119 {offsets = [32, 0], sizes = [8, 16], strides = [1, 1]} : vector<288x16xf32> to vector<8x16xf32>
    %125 = vector.extract_strided_slice %119 {offsets = [40, 0], sizes = [8, 16], strides = [1, 1]} : vector<288x16xf32> to vector<8x16xf32>
    %126 = vector.extract_strided_slice %119 {offsets = [48, 0], sizes = [8, 16], strides = [1, 1]} : vector<288x16xf32> to vector<8x16xf32>
    %127 = vector.extract_strided_slice %119 {offsets = [56, 0], sizes = [8, 16], strides = [1, 1]} : vector<288x16xf32> to vector<8x16xf32>
    %128 = vector.extract_strided_slice %119 {offsets = [64, 0], sizes = [8, 16], strides = [1, 1]} : vector<288x16xf32> to vector<8x16xf32>
    %129 = vector.extract_strided_slice %119 {offsets = [72, 0], sizes = [8, 16], strides = [1, 1]} : vector<288x16xf32> to vector<8x16xf32>
    %130 = vector.extract_strided_slice %119 {offsets = [80, 0], sizes = [8, 16], strides = [1, 1]} : vector<288x16xf32> to vector<8x16xf32>
    %131 = vector.extract_strided_slice %119 {offsets = [88, 0], sizes = [8, 16], strides = [1, 1]} : vector<288x16xf32> to vector<8x16xf32>
    %132 = vector.extract_strided_slice %119 {offsets = [96, 0], sizes = [8, 16], strides = [1, 1]} : vector<288x16xf32> to vector<8x16xf32>
    %133 = vector.extract_strided_slice %119 {offsets = [104, 0], sizes = [8, 16], strides = [1, 1]} : vector<288x16xf32> to vector<8x16xf32>
    %134 = vector.extract_strided_slice %119 {offsets = [112, 0], sizes = [8, 16], strides = [1, 1]} : vector<288x16xf32> to vector<8x16xf32>
    %135 = vector.extract_strided_slice %119 {offsets = [120, 0], sizes = [8, 16], strides = [1, 1]} : vector<288x16xf32> to vector<8x16xf32>
    %136 = vector.extract_strided_slice %119 {offsets = [128, 0], sizes = [8, 16], strides = [1, 1]} : vector<288x16xf32> to vector<8x16xf32>
    %137 = vector.extract_strided_slice %119 {offsets = [136, 0], sizes = [8, 16], strides = [1, 1]} : vector<288x16xf32> to vector<8x16xf32>
    %138 = vector.extract_strided_slice %119 {offsets = [144, 0], sizes = [8, 16], strides = [1, 1]} : vector<288x16xf32> to vector<8x16xf32>
    %139 = vector.extract_strided_slice %119 {offsets = [152, 0], sizes = [8, 16], strides = [1, 1]} : vector<288x16xf32> to vector<8x16xf32>
    %140 = vector.extract_strided_slice %119 {offsets = [160, 0], sizes = [8, 16], strides = [1, 1]} : vector<288x16xf32> to vector<8x16xf32>
    %141 = vector.extract_strided_slice %119 {offsets = [168, 0], sizes = [8, 16], strides = [1, 1]} : vector<288x16xf32> to vector<8x16xf32>
    %142 = vector.extract_strided_slice %119 {offsets = [176, 0], sizes = [8, 16], strides = [1, 1]} : vector<288x16xf32> to vector<8x16xf32>
    %143 = vector.extract_strided_slice %119 {offsets = [184, 0], sizes = [8, 16], strides = [1, 1]} : vector<288x16xf32> to vector<8x16xf32>
    %144 = vector.extract_strided_slice %119 {offsets = [192, 0], sizes = [8, 16], strides = [1, 1]} : vector<288x16xf32> to vector<8x16xf32>
    %145 = vector.extract_strided_slice %119 {offsets = [200, 0], sizes = [8, 16], strides = [1, 1]} : vector<288x16xf32> to vector<8x16xf32>
    %146 = vector.extract_strided_slice %119 {offsets = [208, 0], sizes = [8, 16], strides = [1, 1]} : vector<288x16xf32> to vector<8x16xf32>
    %147 = vector.extract_strided_slice %119 {offsets = [216, 0], sizes = [8, 16], strides = [1, 1]} : vector<288x16xf32> to vector<8x16xf32>
    %148 = vector.extract_strided_slice %119 {offsets = [224, 0], sizes = [8, 16], strides = [1, 1]} : vector<288x16xf32> to vector<8x16xf32>
    %149 = vector.extract_strided_slice %119 {offsets = [232, 0], sizes = [8, 16], strides = [1, 1]} : vector<288x16xf32> to vector<8x16xf32>
    %150 = vector.extract_strided_slice %119 {offsets = [240, 0], sizes = [8, 16], strides = [1, 1]} : vector<288x16xf32> to vector<8x16xf32>
    %151 = vector.extract_strided_slice %119 {offsets = [248, 0], sizes = [8, 16], strides = [1, 1]} : vector<288x16xf32> to vector<8x16xf32>
    %152 = vector.extract_strided_slice %119 {offsets = [256, 0], sizes = [8, 16], strides = [1, 1]} : vector<288x16xf32> to vector<8x16xf32>
    %153 = vector.extract_strided_slice %119 {offsets = [264, 0], sizes = [8, 16], strides = [1, 1]} : vector<288x16xf32> to vector<8x16xf32>
    %154 = vector.extract_strided_slice %119 {offsets = [272, 0], sizes = [8, 16], strides = [1, 1]} : vector<288x16xf32> to vector<8x16xf32>
    %155 = vector.extract_strided_slice %119 {offsets = [280, 0], sizes = [8, 16], strides = [1, 1]} : vector<288x16xf32> to vector<8x16xf32>
    %156 = arith.maximumf %120, %121 : vector<8x16xf32>
    %157 = arith.maximumf %126, %127 : vector<8x16xf32>
    %158 = arith.maximumf %156, %157 : vector<8x16xf32>
    %159 = arith.maximumf %122, %123 : vector<8x16xf32>
    %160 = arith.maximumf %128, %129 : vector<8x16xf32>
    %161 = arith.maximumf %159, %160 : vector<8x16xf32>
    %162 = arith.maximumf %124, %125 : vector<8x16xf32>
    %163 = arith.maximumf %130, %131 : vector<8x16xf32>
    %164 = arith.maximumf %162, %163 : vector<8x16xf32>
    %165 = arith.maximumf %132, %133 : vector<8x16xf32>
    %166 = arith.maximumf %138, %139 : vector<8x16xf32>
    %167 = arith.maximumf %165, %166 : vector<8x16xf32>
    %168 = arith.maximumf %134, %135 : vector<8x16xf32>
    %169 = arith.maximumf %140, %141 : vector<8x16xf32>
    %170 = arith.maximumf %168, %169 : vector<8x16xf32>
    %171 = arith.maximumf %136, %137 : vector<8x16xf32>
    %172 = arith.maximumf %142, %143 : vector<8x16xf32>
    %173 = arith.maximumf %171, %172 : vector<8x16xf32>
    %174 = arith.maximumf %144, %145 : vector<8x16xf32>
    %175 = arith.maximumf %150, %151 : vector<8x16xf32>
    %176 = arith.maximumf %174, %175 : vector<8x16xf32>
    %177 = arith.maximumf %146, %147 : vector<8x16xf32>
    %178 = arith.maximumf %152, %153 : vector<8x16xf32>
    %179 = arith.maximumf %177, %178 : vector<8x16xf32>
    %180 = arith.maximumf %148, %149 : vector<8x16xf32>
    %181 = arith.maximumf %154, %155 : vector<8x16xf32>
    %182 = arith.maximumf %180, %181 : vector<8x16xf32>
    %183 = tpu.concatenate %158, %161, %167, %170 in 1 : vector<8x16xf32>, vector<8x16xf32>, vector<8x16xf32>, vector<8x16xf32> -> vector<8x64xf32>
    %184 = tpu.concatenate %161, %164, %170, %173 in 1 : vector<8x16xf32>, vector<8x16xf32>, vector<8x16xf32>, vector<8x16xf32> -> vector<8x64xf32>
    %185 = tpu.concatenate %167, %170, %176, %179 in 1 : vector<8x16xf32>, vector<8x16xf32>, vector<8x16xf32>, vector<8x16xf32> -> vector<8x64xf32>
    %186 = tpu.concatenate %170, %173, %179, %182 in 1 : vector<8x16xf32>, vector<8x16xf32>, vector<8x16xf32>, vector<8x16xf32> -> vector<8x64xf32>
    %187 = tpu.concatenate %183, %184, %185, %186 in 0 : vector<8x64xf32>, vector<8x64xf32>, vector<8x64xf32>, vector<8x64xf32> -> vector<32x64xf32>
    %c0_6 = arith.constant 0 : index
    %c0_7 = arith.constant 0 : index
    %188 = vector.load %arg4[%c0_6, %c0_7] : memref<64x32xf32, #tpu.memory_space<vmem>>, vector<64x32xf32>
    %cst_8 = arith.constant dense<0.000000e+00> : vector<32x32xf32>
    %189 = tpu.matmul %187, %188, %cst_8 {dimension_numbers = #tpu.dot_dimension_numbers<[1], [0], [0], [1], [0, 0, 1, 1], [], []>} : vector<32x64xf32>, vector<64x32xf32>, vector<32x32xf32> -> vector<32x32xf32>
    %c0_9 = arith.constant 0 : index
    %c0_10 = arith.constant 0 : index
    %190 = vector.load %arg5[%c0_9, %c0_10] : memref<1x32xf32, #tpu.memory_space<vmem>>, vector<1x32xf32>
    %191 = vector.broadcast %190 : vector<1x32xf32> to vector<32x32xf32>
    %192 = arith.addf %189, %191 : vector<32x32xf32>
    %cst_11 = arith.constant 0.000000e+00 : f32
    %193 = vector.broadcast %cst_11 : f32 to vector<32x32xf32>
    %194 = arith.maximumf %192, %193 : vector<32x32xf32>
    %195 = vector.extract_strided_slice %194 {offsets = [0, 0], sizes = [8, 32], strides = [1, 1]} : vector<32x32xf32> to vector<8x32xf32>
    %196 = vector.extract_strided_slice %194 {offsets = [8, 0], sizes = [8, 32], strides = [1, 1]} : vector<32x32xf32> to vector<8x32xf32>
    %197 = vector.extract_strided_slice %194 {offsets = [16, 0], sizes = [8, 32], strides = [1, 1]} : vector<32x32xf32> to vector<8x32xf32>
    %198 = vector.extract_strided_slice %194 {offsets = [24, 0], sizes = [8, 32], strides = [1, 1]} : vector<32x32xf32> to vector<8x32xf32>
    %199 = tpu.concatenate %195, %196, %197, %198 in 1 : vector<8x32xf32>, vector<8x32xf32>, vector<8x32xf32>, vector<8x32xf32> -> vector<8x128xf32>
    %c0_12 = arith.constant 0 : index
    %c0_13 = arith.constant 0 : index
    %200 = vector.load %arg6[%c0_12, %c0_13] : memref<128x64xf32, #tpu.memory_space<vmem>>, vector<128x64xf32>
    %cst_14 = arith.constant dense<0.000000e+00> : vector<8x64xf32>
    %201 = tpu.matmul %199, %200, %cst_14 {dimension_numbers = #tpu.dot_dimension_numbers<[1], [0], [0], [1], [0, 0, 1, 1], [], []>} : vector<8x128xf32>, vector<128x64xf32>, vector<8x64xf32> -> vector<8x64xf32>
    %c0_15 = arith.constant 0 : index
    %c0_16 = arith.constant 0 : index
    %202 = vector.load %arg7[%c0_15, %c0_16] : memref<1x64xf32, #tpu.memory_space<vmem>>, vector<1x64xf32>
    %203 = vector.broadcast %202 : vector<1x64xf32> to vector<8x64xf32>
    %204 = arith.addf %201, %203 : vector<8x64xf32>
    %cst_17 = arith.constant 0.000000e+00 : f32
    %205 = vector.broadcast %cst_17 : f32 to vector<8x64xf32>
    %206 = arith.maximumf %204, %205 : vector<8x64xf32>
    %c0_18 = arith.constant 0 : index
    %c0_19 = arith.constant 0 : index
    %207 = vector.load %arg8[%c0_18, %c0_19] : memref<64x128xf32, #tpu.memory_space<vmem>>, vector<64x128xf32>
    %cst_20 = arith.constant dense<0.000000e+00> : vector<8x128xf32>
    %208 = tpu.matmul %206, %207, %cst_20 {dimension_numbers = #tpu.dot_dimension_numbers<[1], [0], [0], [1], [0, 0, 1, 1], [], []>} : vector<8x64xf32>, vector<64x128xf32>, vector<8x128xf32> -> vector<8x128xf32>
    %c0_21 = arith.constant 0 : index
    %c0_22 = arith.constant 0 : index
    %209 = vector.load %arg9[%c0_21, %c0_22] : memref<1x128xf32, #tpu.memory_space<vmem>>, vector<1x128xf32>
    %210 = vector.broadcast %209 : vector<1x128xf32> to vector<8x128xf32>
    %211 = arith.addf %208, %210 : vector<8x128xf32>
    %212 = math.tanh %211 : vector<8x128xf32>
    %c0_23 = arith.constant 0 : index
    %c0_24 = arith.constant 0 : index
    %213 = vector.load %arg10[%c0_23, %c0_24] : memref<128x128xf32, #tpu.memory_space<vmem>>, vector<128x128xf32>
    %cst_25 = arith.constant dense<0.000000e+00> : vector<8x128xf32>
    %214 = tpu.matmul %212, %213, %cst_25 {dimension_numbers = #tpu.dot_dimension_numbers<[1], [0], [0], [1], [0, 0, 1, 1], [], []>} : vector<8x128xf32>, vector<128x128xf32>, vector<8x128xf32> -> vector<8x128xf32>
    %c0_26 = arith.constant 0 : index
    %c0_27 = arith.constant 0 : index
    %215 = vector.load %arg11[%c0_26, %c0_27] : memref<1x128xf32, #tpu.memory_space<vmem>>, vector<1x128xf32>
    %216 = vector.broadcast %215 : vector<1x128xf32> to vector<8x128xf32>
    %217 = arith.addf %214, %216 : vector<8x128xf32>
    %218 = tpu.iota {dimensions = array<i32: 1>} : vector<8x128xi32>
    %c7_i32 = arith.constant 7 : i32
    %219 = vector.broadcast %c7_i32 : i32 to vector<8x128xi32>
    %220 = arith.cmpi slt, %218, %219 : vector<8x128xi32>
    %cst_28 = arith.constant 0xFF800000 : f32
    %221 = vector.broadcast %cst_28 : f32 to vector<8x128xf32>
    %222 = arith.select %220, %217, %221 : vector<8x128xi1>, vector<8x128xf32>
    %cst_29 = arith.constant dense<0xFF800000> : vector<8xf32>
    %223 = vector.multi_reduction <maximumf>, %222, %cst_29 [1] : vector<8x128xf32> to vector<8xf32>
    %224 = vector.shape_cast %223 : vector<8xf32> to vector<8x1xf32>
    %225 = vector.broadcast %224 : vector<8x1xf32> to vector<8x128xf32>
    %226 = arith.subf %222, %225 : vector<8x128xf32>
    %227 = math.exp %226 : vector<8x128xf32>
    %cst_30 = arith.constant dense<0.000000e+00> : vector<8xf32>
    %228 = vector.multi_reduction <add>, %227, %cst_30 [1] : vector<8x128xf32> to vector<8xf32>
    %229 = vector.shape_cast %228 : vector<8xf32> to vector<8x1xf32>
    %230 = math.log %229 : vector<8x1xf32>
    %231 = vector.broadcast %230 : vector<8x1xf32> to vector<8x128xf32>
    %232 = arith.subf %226, %231 : vector<8x128xf32>
    %c7_i32_31 = arith.constant 7 : i32
    %233 = vector.broadcast %c7_i32_31 : i32 to vector<8x128xi32>
    %234 = arith.cmpi slt, %218, %233 : vector<8x128xi32>
    %cst_32 = arith.constant 0.000000e+00 : f32
    %235 = vector.broadcast %cst_32 : f32 to vector<8x128xf32>
    %236 = arith.select %234, %232, %235 : vector<8x128xi1>, vector<8x128xf32>
    %c7_i32_33 = arith.constant 7 : i32
    %237 = vector.broadcast %c7_i32_33 : i32 to vector<8x128xi32>
    %238 = arith.cmpi eq, %218, %237 : vector<8x128xi32>
    %239 = vector.extract_strided_slice %217 {offsets = [0, 7], sizes = [8, 1], strides = [1, 1]} : vector<8x128xf32> to vector<8x1xf32>
    %240 = vector.shape_cast %239 : vector<8x1xf32> to vector<8x1xf32>
    %241 = vector.broadcast %240 : vector<8x1xf32> to vector<8x128xf32>
    %242 = arith.select %238, %241, %236 : vector<8x128xi1>, vector<8x128xf32>
    %c0_34 = arith.constant 0 : index
    %c0_35 = arith.constant 0 : index
    %243 = vector.load %arg12[%c0_34, %c0_35] : memref<8x128xf32, #tpu.memory_space<vmem>>, vector<8x128xf32>
    tpu.vector_store %arg12[%c0_34, %c0_35], %242 {strides = array<i32>} : memref<8x128xf32, #tpu.memory_space<vmem>>, vector<8x128xf32>,
    return
  }
  func.func @transform_0(%arg0: i32) -> (i32, i32) {
    %c0_i32 = arith.constant 0 : i32
    %c0_i32_0 = arith.constant 0 : i32
    return %arg0, %c0_i32 : i32, i32
  }
  func.func @transform_1(%arg0: i32) -> (i32, i32) {
    %c0_i32 = arith.constant 0 : i32
    %c0_i32_0 = arith.constant 0 : i32
    %c0_i32_1 = arith.constant 0 : i32
    return %c0_i32, %c0_i32_0 : i32, i32
  }
  func.func @transform_2(%arg0: i32) -> (i32, i32) {
    %c0_i32 = arith.constant 0 : i32
    %c0_i32_0 = arith.constant 0 : i32
    %c0_i32_1 = arith.constant 0 : i32
    return %c0_i32, %c0_i32_0 : i32, i32
  }
  func.func @transform_3(%arg0: i32) -> (i32, i32) {
    %c0_i32 = arith.constant 0 : i32
    %c0_i32_0 = arith.constant 0 : i32
    %c0_i32_1 = arith.constant 0 : i32
    return %c0_i32, %c0_i32_0 : i32, i32
  }
  func.func @transform_4(%arg0: i32) -> (i32, i32) {
    %c0_i32 = arith.constant 0 : i32
    %c0_i32_0 = arith.constant 0 : i32
    %c0_i32_1 = arith.constant 0 : i32
    return %c0_i32, %c0_i32_0 : i32, i32
  }
  func.func @transform_5(%arg0: i32) -> (i32, i32) {
    %c0_i32 = arith.constant 0 : i32
    %c0_i32_0 = arith.constant 0 : i32
    %c0_i32_1 = arith.constant 0 : i32
    return %c0_i32, %c0_i32_0 : i32, i32
  }
  func.func @transform_6(%arg0: i32) -> (i32, i32) {
    %c0_i32 = arith.constant 0 : i32
    %c0_i32_0 = arith.constant 0 : i32
    %c0_i32_1 = arith.constant 0 : i32
    return %c0_i32, %c0_i32_0 : i32, i32
  }
  func.func @transform_7(%arg0: i32) -> (i32, i32) {
    %c0_i32 = arith.constant 0 : i32
    %c0_i32_0 = arith.constant 0 : i32
    %c0_i32_1 = arith.constant 0 : i32
    return %c0_i32, %c0_i32_0 : i32, i32
  }
  func.func @transform_8(%arg0: i32) -> (i32, i32) {
    %c0_i32 = arith.constant 0 : i32
    %c0_i32_0 = arith.constant 0 : i32
    %c0_i32_1 = arith.constant 0 : i32
    return %c0_i32, %c0_i32_0 : i32, i32
  }
  func.func @transform_9(%arg0: i32) -> (i32, i32) {
    %c0_i32 = arith.constant 0 : i32
    %c0_i32_0 = arith.constant 0 : i32
    %c0_i32_1 = arith.constant 0 : i32
    return %c0_i32, %c0_i32_0 : i32, i32
  }
  func.func @transform_10(%arg0: i32) -> (i32, i32) {
    %c0_i32 = arith.constant 0 : i32
    %c0_i32_0 = arith.constant 0 : i32
    %c0_i32_1 = arith.constant 0 : i32
    return %c0_i32, %c0_i32_0 : i32, i32
  }
  func.func @transform_11(%arg0: i32) -> (i32, i32) {
    %c0_i32 = arith.constant 0 : i32
    %c0_i32_0 = arith.constant 0 : i32
    return %arg0, %c0_i32 : i32, i32
  }
}

</mosaic_0001>

<llo_original>
// kernel: ac_model_forward.1
$region0: #{ac_model_forward.1}
  #allocation0 [shape = 'u32[]', space=smem, size = 0x4, offset = 0x4, fixed_abs, tag = 'smem constant byte address 0x4 - core index']
  #allocation1 [shape = 'u32[144,128]{1,0:T(1,128)}', space=vmem, size = 0x12000, scoped, tag = 'internal scratch']
  %s0 = inlined_call_operand.vmem [shape: f32[8,224], index: 0, kind: input, shape index: {}]
  %s1 = inlined_call_operand.vmem [shape: f32[12,16], index: 1, kind: input, shape index: {}]
  %s2 = inlined_call_operand.vmem [shape: f32[1,16], index: 2, kind: input, shape index: {}]
  %s3 = inlined_call_operand.vmem [shape: f32[64,32], index: 3, kind: input, shape index: {}]
  %s4 = inlined_call_operand.vmem [shape: f32[1,32], index: 4, kind: input, shape index: {}]
  %s5 = inlined_call_operand.vmem [shape: f32[128,64], index: 5, kind: input, shape index: {}]
  %s6 = inlined_call_operand.vmem [shape: f32[1,64], index: 6, kind: input, shape index: {}]
  %s7 = inlined_call_operand.vmem [shape: f32[64,128], index: 7, kind: input, shape index: {}]
  %s8 = inlined_call_operand.vmem [shape: f32[1,128], index: 8, kind: input, shape index: {}]
  %s9 = inlined_call_operand.vmem [shape: f32[128,128], index: 9, kind: input, shape index: {}]
  %s10 = inlined_call_operand.vmem [shape: f32[1,128], index: 10, kind: input, shape index: {}]
  %s11 = inlined_call_operand.vmem [shape: f32[8,128], index: 11, kind: output, shape index: {}]
  %s12 = sld [smem:[#allocation0]]
  $region54: #{ac_model_forward.1} parent=0
    _
  %s14 = ssub.s32 1, %s12
  %s15 = scalar_select 0, %s14, %s12
  // Predicated region
  $region2: #{ac_model_forward.1} parent=0 // pred_check
    _
  $region3: #{ac_model_forward.1} parent=0 // pred_check_branch
    %17 = sbr.rel (0) target = $region5
  $region4: #{ac_model_forward.1} parent=0 // pred_region
    _
  $region5: #{ac_model_forward.1} parent=0 // pred_fallthru
    _
  // Predicated region
  $region6: #{ac_model_forward.1} parent=0 // pred_check
    _
  $region7: #{ac_model_forward.1} parent=0 // pred_check_branch
    %19 = sbr.rel (0) target = $region9
  $region8: #{ac_model_forward.1} parent=0 // pred_region
    _
  $region9: #{ac_model_forward.1} parent=0 // pred_fallthru
    _
  // Predicated region
  $region10: #{ac_model_forward.1} parent=0 // pred_check
    _
  $region11: #{ac_model_forward.1} parent=0 // pred_check_branch
    %21 = sbr.rel (0) target = $region13
  $region12: #{ac_model_forward.1} parent=0 // pred_region
    _
  $region13: #{ac_model_forward.1} parent=0 // pred_fallthru
    _
  // Predicated region
  $region14: #{ac_model_forward.1} parent=0 // pred_check
    _
  $region15: #{ac_model_forward.1} parent=0 // pred_check_branch
    %23 = sbr.rel (0) target = $region17
  $region16: #{ac_model_forward.1} parent=0 // pred_region
    _
  $region17: #{ac_model_forward.1} parent=0 // pred_fallthru
    _
  // Predicated region
  $region18: #{ac_model_forward.1} parent=0 // pred_check
    _
  $region19: #{ac_model_forward.1} parent=0 // pred_check_branch
    %25 = sbr.rel (0) target = $region21
  $region20: #{ac_model_forward.1} parent=0 // pred_region
    _
  $region21: #{ac_model_forward.1} parent=0 // pred_fallthru
    _
  // Predicated region
  $region22: #{ac_model_forward.1} parent=0 // pred_check
    _
  $region23: #{ac_model_forward.1} parent=0 // pred_check_branch
    %27 = sbr.rel (0) target = $region25
  $region24: #{ac_model_forward.1} parent=0 // pred_region
    _
  $region25: #{ac_model_forward.1} parent=0 // pred_fallthru
    _
  // Predicated region
  $region26: #{ac_model_forward.1} parent=0 // pred_check
    _
  $region27: #{ac_model_forward.1} parent=0 // pred_check_branch
    %29 = sbr.rel (0) target = $region29
  $region28: #{ac_model_forward.1} parent=0 // pred_region
    _
  $region29: #{ac_model_forward.1} parent=0 // pred_fallthru
    _
  // Predicated region
  $region30: #{ac_model_forward.1} parent=0 // pred_check
    _
  $region31: #{ac_model_forward.1} parent=0 // pred_check_branch
    %31 = sbr.rel (0) target = $region33
  $region32: #{ac_model_forward.1} parent=0 // pred_region
    _
  $region33: #{ac_model_forward.1} parent=0 // pred_fallthru
    _
  // Predicated region
  $region34: #{ac_model_forward.1} parent=0 // pred_check
    _
  $region35: #{ac_model_forward.1} parent=0 // pred_check_branch
    %33 = sbr.rel (0) target = $region37
  $region36: #{ac_model_forward.1} parent=0 // pred_region
    _
  $region37: #{ac_model_forward.1} parent=0 // pred_fallthru
    _
  // Predicated region
  $region38: #{ac_model_forward.1} parent=0 // pred_check
    _
  $region39: #{ac_model_forward.1} parent=0 // pred_check_branch
    %35 = sbr.rel (0) target = $region41
  $region40: #{ac_model_forward.1} parent=0 // pred_region
    _
  $region41: #{ac_model_forward.1} parent=0 // pred_fallthru
    _
  // Predicated region
  $region42: #{ac_model_forward.1} parent=0 // pred_check
    _
  $region43: #{ac_model_forward.1} parent=0 // pred_check_branch
    %37 = sbr.rel (0) target = $region45
  $region44: #{ac_model_forward.1} parent=0 // pred_region
    _
  $region45: #{ac_model_forward.1} parent=0 // pred_fallthru
    _
  %v38 = vld [vmem:[%s0] sm:$0xff]
  %v39 = vld [vmem:[%s0 + $0x8] sm:$0xff]
  %41 = vrot.lane.b32.xlu0 %v38, 102
  %v42 = vpop.permute.xlu0 %41
  %vm44 = vcmask 48128
  %v45 = vsel %vm44, %v38, %v42
  %46 = vrot.lane.b32.xlu0 %v38, 125
  %v47 = vpop.permute.xlu0 %46
  %49 = vrot.lane.b32.xlu0 %v38, 99
  %v50 = vpop.permute.xlu0 %49
  %v52 = vsel %vm44, %v47, %v50
  %53 = vrot.lane.b32.xlu0 %v38, 122
  %v54 = vpop.permute.xlu0 %53
  %56 = vrot.lane.b32.xlu0 %v38, 96
  %v57 = vpop.permute.xlu0 %56
  %v59 = vsel %vm44, %v54, %v57
  %60 = vrot.lane.b32.xlu0 %v38, 119
  %v61 = vpop.permute.xlu0 %60
  %63 = vrot.lane.b32.xlu0 %v38, 93
  %v64 = vpop.permute.xlu0 %63
  %v66 = vsel %vm44, %v61, %v64
  %67 = vrot.lane.b32.xlu0 %v38, 116
  %v68 = vpop.permute.xlu0 %67
  %70 = vrot.lane.b32.xlu0 %v38, 90
  %v71 = vpop.permute.xlu0 %70
  %v73 = vsel %vm44, %v68, %v71
  %74 = vrot.lane.b32.xlu0 %v38, 113
  %v75 = vpop.permute.xlu0 %74
  %77 = vrot.lane.b32.xlu0 %v38, 87
  %v78 = vpop.permute.xlu0 %77
  %v80 = vsel %vm44, %v75, %v78
  %81 = vrot.lane.b32.xlu0 %v38, 70
  %v82 = vpop.permute.xlu0 %81
  %v84 = vsel %vm44, %v57, %v82
  %85 = vrot.lane.b32.xlu0 %v38, 67
  %v86 = vpop.permute.xlu0 %85
  %v88 = vsel %vm44, %v64, %v86
  %89 = vrot.lane.b32.xlu0 %v38, 64
  %v90 = vpop.permute.xlu0 %89
  %v92 = vsel %vm44, %v71, %v90
  %93 = vrot.lane.b32.xlu0 %v38, 61
  %v94 = vpop.permute.xlu0 %93
  %v96 = vsel %vm44, %v78, %v94
  %97 = vrot.lane.b32.xlu0 %v38, 84
  %v98 = vpop.permute.xlu0 %97
  %100 = vrot.lane.b32.xlu0 %v38, 58
  %v101 = vpop.permute.xlu0 %100
  %v103 = vsel %vm44, %v98, %v101
  %104 = vrot.lane.b32.xlu0 %v38, 81
  %v105 = vpop.permute.xlu0 %104
  %107 = vrot.lane.b32.xlu0 %v38, 55
  %v108 = vpop.permute.xlu0 %107
  %v110 = vsel %vm44, %v105, %v108
  %111 = vrot.lane.b32.xlu0 %v38, 38
  %v112 = vpop.permute.xlu0 %111
  %v114 = vsel %vm44, %v90, %v112
  %115 = vrot.lane.b32.xlu0 %v38, 35
  %v116 = vpop.permute.xlu0 %115
  %v118 = vsel %vm44, %v94, %v116
  %119 = vrot.lane.b32.xlu0 %v38, 32
  %v120 = vpop.permute.xlu0 %119
  %v122 = vsel %vm44, %v101, %v120
  %123 = vrot.lane.b32.xlu0 %v38, 29
  %v124 = vpop.permute.xlu0 %123
  %v126 = vsel %vm44, %v108, %v124
  %127 = vrot.lane.b32.xlu0 %v38, 52
  %v128 = vpop.permute.xlu0 %127
  %130 = vrot.lane.b32.xlu0 %v38, 26
  %v131 = vpop.permute.xlu0 %130
  %v133 = vsel %vm44, %v128, %v131
  %134 = vrot.lane.b32.xlu0 %v38, 49
  %v135 = vpop.permute.xlu0 %134
  %137 = vrot.lane.b32.xlu0 %v38, 23
  %v138 = vpop.permute.xlu0 %137
  %v140 = vsel %vm44, %v135, %v138
  %142 = vrot.lane.b32.xlu0 %v39, 6
  %v143 = vpop.permute.xlu0 %142
  %v145 = vsel %vm44, %v120, %v143
  %146 = vrot.lane.b32.xlu0 %v39, 3
  %v147 = vpop.permute.xlu0 %146
  %v149 = vsel %vm44, %v124, %v147
  %v150 = vsel %vm44, %v131, %v39
  %151 = vrot.lane.b32.xlu0 %v39, 125
  %v152 = vpop.permute.xlu0 %151
  %v154 = vsel %vm44, %v138, %v152
  %155 = vrot.lane.b32.xlu0 %v38, 20
  %v156 = vpop.permute.xlu0 %155
  %158 = vrot.lane.b32.xlu0 %v39, 122
  %v159 = vpop.permute.xlu0 %158
  %v161 = vsel %vm44, %v156, %v159
  %162 = vrot.lane.b32.xlu0 %v38, 17
  %v163 = vpop.permute.xlu0 %162
  %165 = vrot.lane.b32.xlu0 %v39, 119
  %v166 = vpop.permute.xlu0 %165
  %v168 = vsel %vm44, %v163, %v166
  %169 = vrot.lane.b32.xlu0 %v39, 102
  %v170 = vpop.permute.xlu0 %169
  %v172 = vsel %vm44, %v39, %v170
  %173 = vrot.lane.b32.xlu0 %v39, 99
  %v174 = vpop.permute.xlu0 %173
  %v176 = vsel %vm44, %v152, %v174
  %177 = vrot.lane.b32.xlu0 %v39, 96
  %v178 = vpop.permute.xlu0 %177
  %v180 = vsel %vm44, %v159, %v178
  %181 = vrot.lane.b32.xlu0 %v39, 93
  %v182 = vpop.permute.xlu0 %181
  %v184 = vsel %vm44, %v166, %v182
  %185 = vrot.lane.b32.xlu0 %v39, 116
  %v186 = vpop.permute.xlu0 %185
  %188 = vrot.lane.b32.xlu0 %v39, 90
  %v189 = vpop.permute.xlu0 %188
  %v191 = vsel %vm44, %v186, %v189
  %192 = vrot.lane.b32.xlu0 %v39, 113
  %v193 = vpop.permute.xlu0 %192
  %195 = vrot.lane.b32.xlu0 %v39, 87
  %v196 = vpop.permute.xlu0 %195
  %v198 = vsel %vm44, %v193, %v196
  %199 = vrot.lane.b32.xlu0 %v39, 70
  %v200 = vpop.permute.xlu0 %199
  %v202 = vsel %vm44, %v178, %v200
  %203 = vrot.lane.b32.xlu0 %v39, 67
  %v204 = vpop.permute.xlu0 %203
  %v206 = vsel %vm44, %v182, %v204
  %207 = vrot.lane.b32.xlu0 %v39, 64
  %v208 = vpop.permute.xlu0 %207
  %v210 = vsel %vm44, %v189, %v208
  %211 = vrot.lane.b32.xlu0 %v39, 61
  %v212 = vpop.permute.xlu0 %211
  %v214 = vsel %vm44, %v196, %v212
  %215 = vrot.lane.b32.xlu0 %v39, 84
  %v216 = vpop.permute.xlu0 %215
  %218 = vrot.lane.b32.xlu0 %v39, 58
  %v219 = vpop.permute.xlu0 %218
  %v221 = vsel %vm44, %v216, %v219
  %222 = vrot.lane.b32.xlu0 %v39, 81
  %v223 = vpop.permute.xlu0 %222
  %225 = vrot.lane.b32.xlu0 %v39, 55
  %v226 = vpop.permute.xlu0 %225
  %v228 = vsel %vm44, %v223, %v226
  %v229 = vld [vmem:[%s1] sm:$0xff]
  %v230 = vld [vmem:[%s1 + $0x8] sm:$0xf]
  %v231 = vld [vmem:[%s2] sm:$0x1]
  %v233 = vlaneseq
  %v234 = vshrl.u32 %v233, 7
  %v235 = vsub.s32 0, %v234
  %v236 = vrot.slane %v231, %v235
  %vm238 = vcmask 97280
  %v240 = vsel %vm238, %v45, 0
  %v243 = vsel %vm238, %v52, 0
  %v246 = vsel %vm238, %v59, 0
  %v249 = vsel %vm238, %v66, 0
  %v252 = vsel %vm238, %v73, 0
  %v255 = vsel %vm238, %v80, 0
  %v258 = vsel %vm238, %v84, 0
  %v261 = vsel %vm238, %v88, 0
  %v264 = vsel %vm238, %v92, 0
  %v267 = vsel %vm238, %v96, 0
  %v270 = vsel %vm238, %v103, 0
  %v273 = vsel %vm238, %v110, 0
  %v276 = vsel %vm238, %v114, 0
  %v279 = vsel %vm238, %v118, 0
  %v282 = vsel %vm238, %v122, 0
  %v285 = vsel %vm238, %v126, 0
  %v288 = vsel %vm238, %v133, 0
  %v291 = vsel %vm238, %v140, 0
  %v294 = vsel %vm238, %v145, 0
  %v297 = vsel %vm238, %v149, 0
  %v300 = vsel %vm238, %v150, 0
  %v303 = vsel %vm238, %v154, 0
  %v306 = vsel %vm238, %v161, 0
  %v309 = vsel %vm238, %v168, 0
  %v312 = vsel %vm238, %v172, 0
  %v315 = vsel %vm238, %v176, 0
  %v318 = vsel %vm238, %v180, 0
  %v321 = vsel %vm238, %v184, 0
  %v324 = vsel %vm238, %v191, 0
  %v327 = vsel %vm238, %v198, 0
  %v330 = vsel %vm238, %v202, 0
  %v333 = vsel %vm238, %v206, 0
  %v336 = vsel %vm238, %v210, 0
  %v339 = vsel %vm238, %v214, 0
  %v342 = vsel %vm238, %v221, 0
  %v345 = vsel %vm238, %v228, 0
  %vm347 = vcmask 1043456
  %v349 = vsel %vm347, %v230, 0
  %351 = vmatprep.subr.mxu0 0.0
  %352 = vmatpush1.msra.mxu0 0.0
  %353 = vmatprep.subr.mxu0 0.0
  %354 = vmatpush1.msra.mxu0 0.0
  %355 = vmatprep.subr.mxu0 0.0
  %356 = vmatpush1.msra.mxu0 0.0
  %357 = vmatprep.subr.mxu0 0.0
  %358 = vmatpush1.msra.mxu0 0.0
  %359 = vmatprep.subr.mxu0 0.0
  %360 = vmatpush1.msra.mxu0 0.0
  %361 = vmatprep.subr.mxu0 0.0
  %362 = vmatpush1.msra.mxu0 0.0
  %363 = vmatprep.subr.mxu0 0.0
  %364 = vmatpush1.msra.mxu0 0.0
  %365 = vmatprep.subr.mxu0 0.0
  %366 = vmatpush1.msra.mxu0 0.0
  %367 = vmatprep.subr.mxu0 0.0
  %368 = vmatpush1.msra.mxu0 0.0
  %369 = vmatprep.subr.mxu0 0.0
  %370 = vmatpush1.msra.mxu0 0.0
  %371 = vmatprep.subr.mxu0 0.0
  %372 = vmatpush1.msra.mxu0 0.0
  %373 = vmatprep.subr.mxu0 0.0
  %374 = vmatpush1.msra.mxu0 0.0
  %375 = vmatprep.subr.mxu0 0.0
  %376 = vmatpush1.msra.mxu0 0.0
  %377 = vmatprep.subr.mxu0 0.0
  %378 = vmatpush1.msra.mxu0 0.0
  %379 = vmatprep.subr.mxu0 0.0
  %380 = vmatpush1.msra.mxu0 %v349
  %381 = vmatprep.subr.mxu0 0.0
  %382 = vmatpush1.msra.mxu0 %v229
  %383 = vmatprep.subr.mxu0 0.0
  %384 = vmatpush2.msra.mxu0 0.0
  %385 = vmatprep.subr.mxu0 0.0
  %386 = vmatpush2.msra.mxu0 0.0
  %387 = vmatprep.subr.mxu0 0.0
  %388 = vmatpush2.msra.mxu0 0.0
  %389 = vmatprep.subr.mxu0 0.0
  %390 = vmatpush2.msra.mxu0 0.0
  %391 = vmatprep.subr.mxu0 0.0
  %392 = vmatpush2.msra.mxu0 0.0
  %393 = vmatprep.subr.mxu0 0.0
  %394 = vmatpush2.msra.mxu0 0.0
  %395 = vmatprep.subr.mxu0 0.0
  %396 = vmatpush2.msra.mxu0 0.0
  %397 = vmatprep.subr.mxu0 0.0
  %398 = vmatpush2.msra.mxu0 0.0
  %399 = vmatprep.subr.mxu0 0.0
  %400 = vmatpush2.msra.mxu0 0.0
  %401 = vmatprep.subr.mxu0 0.0
  %402 = vmatpush2.msra.mxu0 0.0
  %403 = vmatprep.subr.mxu0 0.0
  %404 = vmatpush2.msra.mxu0 0.0
  %405 = vmatprep.subr.mxu0 0.0
  %406 = vmatpush2.msra.mxu0 0.0
  %407 = vmatprep.subr.mxu0 0.0
  %408 = vmatpush2.msra.mxu0 0.0
  %409 = vmatprep.subr.mxu0 0.0
  %410 = vmatpush2.msra.mxu0 0.0
  %411 = vmatprep.subr.mxu0 0.0
  %412 = vmatpush2.msra.mxu0 0.0
  %413 = vmatprep.subr.mxu0 0.0
  %414 = vmatpush2.msra.mxu0 0.0
  %415 = vmatprep.mubr.f32.mxu0 0.0
  %416 = vmatmul.mubr.f32.gmra.mxu0 %v240
  %v417 = vpop.f32.mrf.mxu0
  %v418 = vadd.f32 %v236, %v417
  %v419 = vpop.f32.mrf.mxu0
  %420 = vmatprep.mubr.f32.mxu0 0.0
  %421 = vmatmul.mubr.f32.gmra.mxu0 %v243
  %v422 = vpop.f32.mrf.mxu0
  %v423 = vadd.f32 %v236, %v422
  %v424 = vpop.f32.mrf.mxu0
  %425 = vmatprep.mubr.f32.mxu0 0.0
  %426 = vmatmul.mubr.f32.gmra.mxu0 %v246
  %v427 = vpop.f32.mrf.mxu0
  %v428 = vadd.f32 %v236, %v427
  %v429 = vpop.f32.mrf.mxu0
  %430 = vmatprep.mubr.f32.mxu0 0.0
  %431 = vmatmul.mubr.f32.gmra.mxu0 %v249
  %v432 = vpop.f32.mrf.mxu0
  %v433 = vadd.f32 %v236, %v432
  %v434 = vpop.f32.mrf.mxu0
  %435 = vmatprep.mubr.f32.mxu0 0.0
  %436 = vmatmul.mubr.f32.gmra.mxu0 %v252
  %v437 = vpop.f32.mrf.mxu0
  %v438 = vadd.f32 %v236, %v437
  %v439 = vpop.f32.mrf.mxu0
  %440 = vmatprep.mubr.f32.mxu0 0.0
  %441 = vmatmul.mubr.f32.gmra.mxu0 %v255
  %v442 = vpop.f32.mrf.mxu0
  %v443 = vadd.f32 %v236, %v442
  %v444 = vpop.f32.mrf.mxu0
  %445 = vmatprep.mubr.f32.mxu0 0.0
  %446 = vmatmul.mubr.f32.gmra.mxu0 %v258
  %v447 = vpop.f32.mrf.mxu0
  %v448 = vadd.f32 %v236, %v447
  %v449 = vpop.f32.mrf.mxu0
  %450 = vmatprep.mubr.f32.mxu0 0.0
  %451 = vmatmul.mubr.f32.gmra.mxu0 %v261
  %v452 = vpop.f32.mrf.mxu0
  %v453 = vadd.f32 %v236, %v452
  %v454 = vpop.f32.mrf.mxu0
  %455 = vmatprep.mubr.f32.mxu0 0.0
  %456 = vmatmul.mubr.f32.gmra.mxu0 %v264
  %v457 = vpop.f32.mrf.mxu0
  %v458 = vadd.f32 %v236, %v457
  %v459 = vpop.f32.mrf.mxu0
  %460 = vmatprep.mubr.f32.mxu0 0.0
  %461 = vmatmul.mubr.f32.gmra.mxu0 %v267
  %v462 = vpop.f32.mrf.mxu0
  %v463 = vadd.f32 %v236, %v462
  %v464 = vpop.f32.mrf.mxu0
  %465 = vmatprep.mubr.f32.mxu0 0.0
  %466 = vmatmul.mubr.f32.gmra.mxu0 %v270
  %v467 = vpop.f32.mrf.mxu0
  %v468 = vadd.f32 %v236, %v467
  %v469 = vpop.f32.mrf.mxu0
  %470 = vmatprep.mubr.f32.mxu0 0.0
  %471 = vmatmul.mubr.f32.gmra.mxu0 %v273
  %v472 = vpop.f32.mrf.mxu0
  %v473 = vadd.f32 %v236, %v472
  %v474 = vpop.f32.mrf.mxu0
  %475 = vmatprep.mubr.f32.mxu0 0.0
  %476 = vmatmul.mubr.f32.gmra.mxu0 %v276
  %v477 = vpop.f32.mrf.mxu0
  %v478 = vadd.f32 %v236, %v477
  %v479 = vpop.f32.mrf.mxu0
  %480 = vmatprep.mubr.f32.mxu0 0.0
  %481 = vmatmul.mubr.f32.gmra.mxu0 %v279
  %v482 = vpop.f32.mrf.mxu0
  %v483 = vadd.f32 %v236, %v482
  %v484 = vpop.f32.mrf.mxu0
  %485 = vmatprep.mubr.f32.mxu0 0.0
  %486 = vmatmul.mubr.f32.gmra.mxu0 %v282
  %v487 = vpop.f32.mrf.mxu0
  %v488 = vadd.f32 %v236, %v487
  %v489 = vpop.f32.mrf.mxu0
  %490 = vmatprep.mubr.f32.mxu0 0.0
  %491 = vmatmul.mubr.f32.gmra.mxu0 %v285
  %v492 = vpop.f32.mrf.mxu0
  %v493 = vadd.f32 %v236, %v492
  %v494 = vpop.f32.mrf.mxu0
  %495 = vmatprep.mubr.f32.mxu0 0.0
  %496 = vmatmul.mubr.f32.gmra.mxu0 %v288
  %v497 = vpop.f32.mrf.mxu0
  %v498 = vadd.f32 %v236, %v497
  %v499 = vpop.f32.mrf.mxu0
  %500 = vmatprep.mubr.f32.mxu0 0.0
  %501 = vmatmul.mubr.f32.gmra.mxu0 %v291
  %v502 = vpop.f32.mrf.mxu0
  %v503 = vadd.f32 %v236, %v502
  %v504 = vpop.f32.mrf.mxu0
  %505 = vmatprep.mubr.f32.mxu0 0.0
  %506 = vmatmul.mubr.f32.gmra.mxu0 %v294
  %v507 = vpop.f32.mrf.mxu0
  %v508 = vadd.f32 %v236, %v507
  %v509 = vpop.f32.mrf.mxu0
  %510 = vmatprep.mubr.f32.mxu0 0.0
  %511 = vmatmul.mubr.f32.gmra.mxu0 %v297
  %v512 = vpop.f32.mrf.mxu0
  %v513 = vadd.f32 %v236, %v512
  %v514 = vpop.f32.mrf.mxu0
  %515 = vmatprep.mubr.f32.mxu0 0.0
  %516 = vmatmul.mubr.f32.gmra.mxu0 %v300
  %v517 = vpop.f32.mrf.mxu0
  %v518 = vadd.f32 %v236, %v517
  %v519 = vpop.f32.mrf.mxu0
  %520 = vmatprep.mubr.f32.mxu0 0.0
  %521 = vmatmul.mubr.f32.gmra.mxu0 %v303
  %v522 = vpop.f32.mrf.mxu0
  %v523 = vadd.f32 %v236, %v522
  %v524 = vpop.f32.mrf.mxu0
  %525 = vmatprep.mubr.f32.mxu0 0.0
  %526 = vmatmul.mubr.f32.gmra.mxu0 %v306
  %v527 = vpop.f32.mrf.mxu0
  %v528 = vadd.f32 %v236, %v527
  %v529 = vpop.f32.mrf.mxu0
  %530 = vmatprep.mubr.f32.mxu0 0.0
  %531 = vmatmul.mubr.f32.gmra.mxu0 %v309
  %v532 = vpop.f32.mrf.mxu0
  %v533 = vadd.f32 %v236, %v532
  %v534 = vpop.f32.mrf.mxu0
  %535 = vmatprep.mubr.f32.mxu0 0.0
  %536 = vmatmul.mubr.f32.gmra.mxu0 %v312
  %v537 = vpop.f32.mrf.mxu0
  %v538 = vadd.f32 %v236, %v537
  %v539 = vpop.f32.mrf.mxu0
  %540 = vmatprep.mubr.f32.mxu0 0.0
  %541 = vmatmul.mubr.f32.gmra.mxu0 %v315
  %v542 = vpop.f32.mrf.mxu0
  %v543 = vadd.f32 %v236, %v542
  %v544 = vpop.f32.mrf.mxu0
  %545 = vmatprep.mubr.f32.mxu0 0.0
  %546 = vmatmul.mubr.f32.gmra.mxu0 %v318
  %v547 = vpop.f32.mrf.mxu0
  %v548 = vadd.f32 %v236, %v547
  %v549 = vpop.f32.mrf.mxu0
  %550 = vmatprep.mubr.f32.mxu0 0.0
  %551 = vmatmul.mubr.f32.gmra.mxu0 %v321
  %v552 = vpop.f32.mrf.mxu0
  %v553 = vadd.f32 %v236, %v552
  %v554 = vpop.f32.mrf.mxu0
  %555 = vmatprep.mubr.f32.mxu0 0.0
  %556 = vmatmul.mubr.f32.gmra.mxu0 %v324
  %v557 = vpop.f32.mrf.mxu0
  %v558 = vadd.f32 %v236, %v557
  %v559 = vpop.f32.mrf.mxu0
  %560 = vmatprep.mubr.f32.mxu0 0.0
  %561 = vmatmul.mubr.f32.gmra.mxu0 %v327
  %v562 = vpop.f32.mrf.mxu0
  %v563 = vadd.f32 %v236, %v562
  %v564 = vpop.f32.mrf.mxu0
  %565 = vmatprep.mubr.f32.mxu0 0.0
  %566 = vmatmul.mubr.f32.gmra.mxu0 %v330
  %v567 = vpop.f32.mrf.mxu0
  %v568 = vadd.f32 %v236, %v567
  %v569 = vpop.f32.mrf.mxu0
  %570 = vmatprep.mubr.f32.mxu0 0.0
  %571 = vmatmul.mubr.f32.gmra.mxu0 %v333
  %v572 = vpop.f32.mrf.mxu0
  %v573 = vadd.f32 %v236, %v572
  %v574 = vpop.f32.mrf.mxu0
  %575 = vmatprep.mubr.f32.mxu0 0.0
  %576 = vmatmul.mubr.f32.gmra.mxu0 %v336
  %v577 = vpop.f32.mrf.mxu0
  %v578 = vadd.f32 %v236, %v577
  %v579 = vpop.f32.mrf.mxu0
  %580 = vmatprep.mubr.f32.mxu0 0.0
  %581 = vmatmul.mubr.f32.gmra.mxu0 %v339
  %v582 = vpop.f32.mrf.mxu0
  %v583 = vadd.f32 %v236, %v582
  %v584 = vpop.f32.mrf.mxu0
  %585 = vmatprep.mubr.f32.mxu0 0.0
  %586 = vmatmul.mubr.f32.gmra.mxu0 %v342
  %v587 = vpop.f32.mrf.mxu0
  %v588 = vadd.f32 %v236, %v587
  %v589 = vpop.f32.mrf.mxu0
  %590 = vmatprep.mubr.f32.mxu0 0.0
  %591 = vmatmul.mubr.f32.gmra.mxu0 %v345
  %v592 = vpop.f32.mrf.mxu0
  %v593 = vadd.f32 %v236, %v592
  %v594 = vpop.f32.mrf.mxu0
  %595 = vdwg.mxu0
  %v596 = vmax.f32 %v418, 0.0
  %v597 = vmax.f32 %v423, 0.0
  %v598 = vmax.f32 %v428, 0.0
  %v599 = vmax.f32 %v433, 0.0
  %v600 = vmax.f32 %v438, 0.0
  %v601 = vmax.f32 %v443, 0.0
  %v602 = vmax.f32 %v448, 0.0
  %v603 = vmax.f32 %v453, 0.0
  %v604 = vmax.f32 %v458, 0.0
  %v605 = vmax.f32 %v463, 0.0
  %v606 = vmax.f32 %v468, 0.0
  %v607 = vmax.f32 %v473, 0.0
  %v608 = vmax.f32 %v478, 0.0
  %v609 = vmax.f32 %v483, 0.0
  %v610 = vmax.f32 %v488, 0.0
  %v611 = vmax.f32 %v493, 0.0
  %v612 = vmax.f32 %v498, 0.0
  %v613 = vmax.f32 %v503, 0.0
  %v614 = vmax.f32 %v508, 0.0
  %v615 = vmax.f32 %v513, 0.0
  %v616 = vmax.f32 %v518, 0.0
  %v617 = vmax.f32 %v523, 0.0
  %v618 = vmax.f32 %v528, 0.0
  %v619 = vmax.f32 %v533, 0.0
  %v620 = vmax.f32 %v538, 0.0
  %v621 = vmax.f32 %v543, 0.0
  %v622 = vmax.f32 %v548, 0.0
  %v623 = vmax.f32 %v553, 0.0
  %v624 = vmax.f32 %v558, 0.0
  %v625 = vmax.f32 %v563, 0.0
  %v626 = vmax.f32 %v568, 0.0
  %v627 = vmax.f32 %v573, 0.0
  %v628 = vmax.f32 %v578, 0.0
  %v629 = vmax.f32 %v583, 0.0
  %v630 = vmax.f32 %v588, 0.0
  %v631 = vmax.f32 %v593, 0.0
  %v632 = vmax.f32 %v596, %v597
  %v633 = vmax.f32 %v602, %v603
  %v634 = vmax.f32 %v632, %v633
  %v635 = vmax.f32 %v598, %v599
  %v636 = vmax.f32 %v604, %v605
  %v637 = vmax.f32 %v635, %v636
  %v638 = vmax.f32 %v600, %v601
  %v639 = vmax.f32 %v606, %v607
  %v640 = vmax.f32 %v638, %v639
  %v641 = vmax.f32 %v608, %v609
  %v642 = vmax.f32 %v614, %v615
  %v643 = vmax.f32 %v641, %v642
  %v644 = vmax.f32 %v610, %v611
  %v645 = vmax.f32 %v616, %v617
  %v646 = vmax.f32 %v644, %v645
  %v647 = vmax.f32 %v612, %v613
  %v648 = vmax.f32 %v618, %v619
  %v649 = vmax.f32 %v647, %v648
  %v650 = vmax.f32 %v620, %v621
  %v651 = vmax.f32 %v626, %v627
  %v652 = vmax.f32 %v650, %v651
  %v653 = vmax.f32 %v622, %v623
  %v654 = vmax.f32 %v628, %v629
  %v655 = vmax.f32 %v653, %v654
  %v656 = vmax.f32 %v624, %v625
  %v657 = vmax.f32 %v630, %v631
  %v658 = vmax.f32 %v656, %v657
  %660 = vrot.lane.b32.xlu0 %v637, 16
  %v661 = vpop.permute.xlu0 %660
  %664 = vrot.lane.b32.xlu0 %v643, 32
  %v665 = vpop.permute.xlu0 %664
  %668 = vrot.lane.b32.xlu0 %v646, 48
  %v669 = vpop.permute.xlu0 %668
  %vm671 = vcmask 130048
  %v672 = vsel %vm671, %v634, %v661
  %vm673 = vcmask 261120
  %v674 = vsel %vm673, %v672, %v665
  %vm675 = vcmask 392192
  %v676 = vsel %vm675, %v674, %v669
  %678 = vrot.lane.b32.xlu0 %v640, 16
  %v679 = vpop.permute.xlu0 %678
  %681 = vrot.lane.b32.xlu0 %v646, 32
  %v682 = vpop.permute.xlu0 %681
  %685 = vrot.lane.b32.xlu0 %v649, 48
  %v686 = vpop.permute.xlu0 %685
  %v688 = vsel %vm671, %v637, %v679
  %v689 = vsel %vm673, %v688, %v682
  %v690 = vsel %vm675, %v689, %v686
  %691 = vrot.lane.b32.xlu0 %v646, 16
  %v692 = vpop.permute.xlu0 %691
  %695 = vrot.lane.b32.xlu0 %v652, 32
  %v696 = vpop.permute.xlu0 %695
  %699 = vrot.lane.b32.xlu0 %v655, 48
  %v700 = vpop.permute.xlu0 %699
  %v702 = vsel %vm671, %v643, %v692
  %v703 = vsel %vm673, %v702, %v696
  %v704 = vsel %vm675, %v703, %v700
  %705 = vrot.lane.b32.xlu0 %v649, 16
  %v706 = vpop.permute.xlu0 %705
  %708 = vrot.lane.b32.xlu0 %v655, 32
  %v709 = vpop.permute.xlu0 %708
  %712 = vrot.lane.b32.xlu0 %v658, 48
  %v713 = vpop.permute.xlu0 %712
  %v715 = vsel %vm671, %v646, %v706
  %v716 = vsel %vm673, %v715, %v709
  %v717 = vsel %vm675, %v716, %v713
  %v718 = vld [vmem:[%s3] sm:$0xff]
  %v719 = vld [vmem:[%s3 + $0x8] sm:$0xff]
  %v720 = vld [vmem:[%s3 + $0x10] sm:$0xff]
  %v721 = vld [vmem:[%s3 + $0x18] sm:$0xff]
  %v722 = vld [vmem:[%s3 + $0x20] sm:$0xff]
  %v723 = vld [vmem:[%s3 + $0x28] sm:$0xff]
  %v724 = vld [vmem:[%s3 + $0x30] sm:$0xff]
  %v725 = vld [vmem:[%s3 + $0x38] sm:$0xff]
  %v726 = vld [vmem:[%s4] sm:$0x1]
  %v728 = vlaneseq
  %v729 = vshrl.u32 %v728, 7
  %v730 = vsub.s32 0, %v729
  %v731 = vrot.slane %v726, %v730
  %vm733 = vcmask 523264
  %v735 = vsel %vm733, %v676, 0
  %v738 = vsel %vm733, %v690, 0
  %v741 = vsel %vm733, %v704, 0
  %v744 = vsel %vm733, %v717, 0
  %746 = vmatprep.subr.mxu0 0.0
  %747 = vmatpush1.msra.mxu0 0.0
  %748 = vmatprep.subr.mxu0 0.0
  %749 = vmatpush1.msra.mxu0 0.0
  %750 = vmatprep.subr.mxu0 0.0
  %751 = vmatpush1.msra.mxu0 0.0
  %752 = vmatprep.subr.mxu0 0.0
  %753 = vmatpush1.msra.mxu0 0.0
  %754 = vmatprep.subr.mxu0 0.0
  %755 = vmatpush1.msra.mxu0 0.0
  %756 = vmatprep.subr.mxu0 0.0
  %757 = vmatpush1.msra.mxu0 0.0
  %758 = vmatprep.subr.mxu0 0.0
  %759 = vmatpush1.msra.mxu0 0.0
  %760 = vmatprep.subr.mxu0 0.0
  %761 = vmatpush1.msra.mxu0 0.0
  %762 = vmatprep.subr.mxu0 0.0
  %763 = vmatpush1.msra.mxu0 %v725
  %764 = vmatprep.subr.mxu0 0.0
  %765 = vmatpush1.msra.mxu0 %v724
  %766 = vmatprep.subr.mxu0 0.0
  %767 = vmatpush1.msra.mxu0 %v723
  %768 = vmatprep.subr.mxu0 0.0
  %769 = vmatpush1.msra.mxu0 %v722
  %770 = vmatprep.subr.mxu0 0.0
  %771 = vmatpush1.msra.mxu0 %v721
  %772 = vmatprep.subr.mxu0 0.0
  %773 = vmatpush1.msra.mxu0 %v720
  %774 = vmatprep.subr.mxu0 0.0
  %775 = vmatpush1.msra.mxu0 %v719
  %776 = vmatprep.subr.mxu0 0.0
  %777 = vmatpush1.msra.mxu0 %v718
  %778 = vmatprep.subr.mxu0 0.0
  %779 = vmatpush2.msra.mxu0 0.0
  %780 = vmatprep.subr.mxu0 0.0
  %781 = vmatpush2.msra.mxu0 0.0
  %782 = vmatprep.subr.mxu0 0.0
  %783 = vmatpush2.msra.mxu0 0.0
  %784 = vmatprep.subr.mxu0 0.0
  %785 = vmatpush2.msra.mxu0 0.0
  %786 = vmatprep.subr.mxu0 0.0
  %787 = vmatpush2.msra.mxu0 0.0
  %788 = vmatprep.subr.mxu0 0.0
  %789 = vmatpush2.msra.mxu0 0.0
  %790 = vmatprep.subr.mxu0 0.0
  %791 = vmatpush2.msra.mxu0 0.0
  %792 = vmatprep.subr.mxu0 0.0
  %793 = vmatpush2.msra.mxu0 0.0
  %794 = vmatprep.subr.mxu0 0.0
  %795 = vmatpush2.msra.mxu0 0.0
  %796 = vmatprep.subr.mxu0 0.0
  %797 = vmatpush2.msra.mxu0 0.0
  %798 = vmatprep.subr.mxu0 0.0
  %799 = vmatpush2.msra.mxu0 0.0
  %800 = vmatprep.subr.mxu0 0.0
  %801 = vmatpush2.msra.mxu0 0.0
  %802 = vmatprep.subr.mxu0 0.0
  %803 = vmatpush2.msra.mxu0 0.0
  %804 = vmatprep.subr.mxu0 0.0
  %805 = vmatpush2.msra.mxu0 0.0
  %806 = vmatprep.subr.mxu0 0.0
  %807 = vmatpush2.msra.mxu0 0.0
  %808 = vmatprep.subr.mxu0 0.0
  %809 = vmatpush2.msra.mxu0 0.0
  %810 = vmatprep.mubr.f32.mxu0 0.0
  %811 = vmatmul.mubr.f32.gmra.mxu0 %v735
  %v812 = vpop.f32.mrf.mxu0
  %v813 = vadd.f32 %v731, %v812
  %v814 = vpop.f32.mrf.mxu0
  %815 = vmatprep.mubr.f32.mxu0 0.0
  %816 = vmatmul.mubr.f32.gmra.mxu0 %v738
  %v817 = vpop.f32.mrf.mxu0
  %v818 = vadd.f32 %v731, %v817
  %v819 = vpop.f32.mrf.mxu0
  %820 = vmatprep.mubr.f32.mxu0 0.0
  %821 = vmatmul.mubr.f32.gmra.mxu0 %v741
  %v822 = vpop.f32.mrf.mxu0
  %v823 = vadd.f32 %v731, %v822
  %v824 = vpop.f32.mrf.mxu0
  %825 = vmatprep.mubr.f32.mxu0 0.0
  %826 = vmatmul.mubr.f32.gmra.mxu0 %v744
  %v827 = vpop.f32.mrf.mxu0
  %v828 = vadd.f32 %v731, %v827
  %v829 = vpop.f32.mrf.mxu0
  %830 = vdwg.mxu0
  %v831 = vmax.f32 %v813, 0.0
  %v832 = vmax.f32 %v818, 0.0
  %v833 = vmax.f32 %v823, 0.0
  %v834 = vmax.f32 %v828, 0.0
  %836 = vrot.lane.b32.xlu0 %v832, 32
  %v837 = vpop.permute.xlu0 %836
  %840 = vrot.lane.b32.xlu0 %v833, 64
  %v841 = vpop.permute.xlu0 %840
  %844 = vrot.lane.b32.xlu0 %v834, 96
  %v845 = vpop.permute.xlu0 %844
  %v847 = vsel %vm673, %v831, %v837
  %v848 = vsel %vm733, %v847, %v841
  %vm849 = vcmask 785408
  %v850 = vsel %vm849, %v848, %v845
  %v851 = vld [vmem:[%s5] sm:$0xff]
  %v852 = vld [vmem:[%s5 + $0x8] sm:$0xff]
  %v853 = vld [vmem:[%s5 + $0x10] sm:$0xff]
  %v854 = vld [vmem:[%s5 + $0x18] sm:$0xff]
  %v855 = vld [vmem:[%s5 + $0x20] sm:$0xff]
  %v856 = vld [vmem:[%s5 + $0x28] sm:$0xff]
  %v857 = vld [vmem:[%s5 + $0x30] sm:$0xff]
  %v858 = vld [vmem:[%s5 + $0x38] sm:$0xff]
  %v859 = vld [vmem:[%s5 + $0x40] sm:$0xff]
  %v860 = vld [vmem:[%s5 + $0x48] sm:$0xff]
  %v861 = vld [vmem:[%s5 + $0x50] sm:$0xff]
  %v862 = vld [vmem:[%s5 + $0x58] sm:$0xff]
  %v863 = vld [vmem:[%s5 + $0x60] sm:$0xff]
  %v864 = vld [vmem:[%s5 + $0x68] sm:$0xff]
  %v865 = vld [vmem:[%s5 + $0x70] sm:$0xff]
  %v866 = vld [vmem:[%s5 + $0x78] sm:$0xff]
  %v867 = vld [vmem:[%s6] sm:$0x1]
  %v869 = vlaneseq
  %v870 = vshrl.u32 %v869, 7
  %v871 = vsub.s32 0, %v870
  %v872 = vrot.slane %v867, %v871
  %874 = vmatprep.subr.mxu0 0.0
  %875 = vmatpush1.msra.mxu0 %v866
  %876 = vmatprep.subr.mxu0 0.0
  %877 = vmatpush1.msra.mxu0 %v865
  %878 = vmatprep.subr.mxu0 0.0
  %879 = vmatpush1.msra.mxu0 %v864
  %880 = vmatprep.subr.mxu0 0.0
  %881 = vmatpush1.msra.mxu0 %v863
  %882 = vmatprep.subr.mxu0 0.0
  %883 = vmatpush1.msra.mxu0 %v862
  %884 = vmatprep.subr.mxu0 0.0
  %885 = vmatpush1.msra.mxu0 %v861
  %886 = vmatprep.subr.mxu0 0.0
  %887 = vmatpush1.msra.mxu0 %v860
  %888 = vmatprep.subr.mxu0 0.0
  %889 = vmatpush1.msra.mxu0 %v859
  %890 = vmatprep.subr.mxu0 0.0
  %891 = vmatpush1.msra.mxu0 %v858
  %892 = vmatprep.subr.mxu0 0.0
  %893 = vmatpush1.msra.mxu0 %v857
  %894 = vmatprep.subr.mxu0 0.0
  %895 = vmatpush1.msra.mxu0 %v856
  %896 = vmatprep.subr.mxu0 0.0
  %897 = vmatpush1.msra.mxu0 %v855
  %898 = vmatprep.subr.mxu0 0.0
  %899 = vmatpush1.msra.mxu0 %v854
  %900 = vmatprep.subr.mxu0 0.0
  %901 = vmatpush1.msra.mxu0 %v853
  %902 = vmatprep.subr.mxu0 0.0
  %903 = vmatpush1.msra.mxu0 %v852
  %904 = vmatprep.subr.mxu0 0.0
  %905 = vmatpush1.msra.mxu0 %v851
  %906 = vmatprep.subr.mxu0 0.0
  %907 = vmatpush2.msra.mxu0 0.0
  %908 = vmatprep.subr.mxu0 0.0
  %909 = vmatpush2.msra.mxu0 0.0
  %910 = vmatprep.subr.mxu0 0.0
  %911 = vmatpush2.msra.mxu0 0.0
  %912 = vmatprep.subr.mxu0 0.0
  %913 = vmatpush2.msra.mxu0 0.0
  %914 = vmatprep.subr.mxu0 0.0
  %915 = vmatpush2.msra.mxu0 0.0
  %916 = vmatprep.subr.mxu0 0.0
  %917 = vmatpush2.msra.mxu0 0.0
  %918 = vmatprep.subr.mxu0 0.0
  %919 = vmatpush2.msra.mxu0 0.0
  %920 = vmatprep.subr.mxu0 0.0
  %921 = vmatpush2.msra.mxu0 0.0
  %922 = vmatprep.subr.mxu0 0.0
  %923 = vmatpush2.msra.mxu0 0.0
  %924 = vmatprep.subr.mxu0 0.0
  %925 = vmatpush2.msra.mxu0 0.0
  %926 = vmatprep.subr.mxu0 0.0
  %927 = vmatpush2.msra.mxu0 0.0
  %928 = vmatprep.subr.mxu0 0.0
  %929 = vmatpush2.msra.mxu0 0.0
  %930 = vmatprep.subr.mxu0 0.0
  %931 = vmatpush2.msra.mxu0 0.0
  %932 = vmatprep.subr.mxu0 0.0
  %933 = vmatpush2.msra.mxu0 0.0
  %934 = vmatprep.subr.mxu0 0.0
  %935 = vmatpush2.msra.mxu0 0.0
  %936 = vmatprep.subr.mxu0 0.0
  %937 = vmatpush2.msra.mxu0 0.0
  %938 = vmatprep.mubr.f32.mxu0 0.0
  %939 = vmatmul.mubr.f32.gmra.mxu0 %v850
  %v940 = vpop.f32.mrf.mxu0
  %v941 = vadd.f32 %v872, %v940
  %v942 = vpop.f32.mrf.mxu0
  %943 = vdwg.mxu0
  %v944 = vmax.f32 %v941, 0.0
  %v945 = vld [vmem:[%s7] sm:$0xff]
  %v946 = vld [vmem:[%s7 + $0x8] sm:$0xff]
  %v947 = vld [vmem:[%s7 + $0x10] sm:$0xff]
  %v948 = vld [vmem:[%s7 + $0x18] sm:$0xff]
  %v949 = vld [vmem:[%s7 + $0x20] sm:$0xff]
  %v950 = vld [vmem:[%s7 + $0x28] sm:$0xff]
  %v951 = vld [vmem:[%s7 + $0x30] sm:$0xff]
  %v952 = vld [vmem:[%s7 + $0x38] sm:$0xff]
  %v953 = vld [vmem:[%s8] sm:$0x1]
  %v955 = vlaneseq
  %v956 = vshrl.u32 %v955, 7
  %v957 = vsub.s32 0, %v956
  %v958 = vrot.slane %v953, %v957
  %v961 = vsel %vm733, %v944, 0
  %963 = vmatprep.subr.mxu0 0.0
  %964 = vmatpush1.msra.mxu0 0.0
  %965 = vmatprep.subr.mxu0 0.0
  %966 = vmatpush1.msra.mxu0 0.0
  %967 = vmatprep.subr.mxu0 0.0
  %968 = vmatpush1.msra.mxu0 0.0
  %969 = vmatprep.subr.mxu0 0.0
  %970 = vmatpush1.msra.mxu0 0.0
  %971 = vmatprep.subr.mxu0 0.0
  %972 = vmatpush1.msra.mxu0 0.0
  %973 = vmatprep.subr.mxu0 0.0
  %974 = vmatpush1.msra.mxu0 0.0
  %975 = vmatprep.subr.mxu0 0.0
  %976 = vmatpush1.msra.mxu0 0.0
  %977 = vmatprep.subr.mxu0 0.0
  %978 = vmatpush1.msra.mxu0 0.0
  %979 = vmatprep.subr.mxu0 0.0
  %980 = vmatpush1.msra.mxu0 %v952
  %981 = vmatprep.subr.mxu0 0.0
  %982 = vmatpush1.msra.mxu0 %v951
  %983 = vmatprep.subr.mxu0 0.0
  %984 = vmatpush1.msra.mxu0 %v950
  %985 = vmatprep.subr.mxu0 0.0
  %986 = vmatpush1.msra.mxu0 %v949
  %987 = vmatprep.subr.mxu0 0.0
  %988 = vmatpush1.msra.mxu0 %v948
  %989 = vmatprep.subr.mxu0 0.0
  %990 = vmatpush1.msra.mxu0 %v947
  %991 = vmatprep.subr.mxu0 0.0
  %992 = vmatpush1.msra.mxu0 %v946
  %993 = vmatprep.subr.mxu0 0.0
  %994 = vmatpush1.msra.mxu0 %v945
  %995 = vmatprep.subr.mxu0 0.0
  %996 = vmatpush2.msra.mxu0 0.0
  %997 = vmatprep.subr.mxu0 0.0
  %998 = vmatpush2.msra.mxu0 0.0
  %999 = vmatprep.subr.mxu0 0.0
  %1000 = vmatpush2.msra.mxu0 0.0
  %1001 = vmatprep.subr.mxu0 0.0
  %1002 = vmatpush2.msra.mxu0 0.0
  %1003 = vmatprep.subr.mxu0 0.0
  %1004 = vmatpush2.msra.mxu0 0.0
  %1005 = vmatprep.subr.mxu0 0.0
  %1006 = vmatpush2.msra.mxu0 0.0
  %1007 = vmatprep.subr.mxu0 0.0
  %1008 = vmatpush2.msra.mxu0 0.0
  %1009 = vmatprep.subr.mxu0 0.0
  %1010 = vmatpush2.msra.mxu0 0.0
  %1011 = vmatprep.subr.mxu0 0.0
  %1012 = vmatpush2.msra.mxu0 0.0
  %1013 = vmatprep.subr.mxu0 0.0
  %1014 = vmatpush2.msra.mxu0 0.0
  %1015 = vmatprep.subr.mxu0 0.0
  %1016 = vmatpush2.msra.mxu0 0.0
  %1017 = vmatprep.subr.mxu0 0.0
  %1018 = vmatpush2.msra.mxu0 0.0
  %1019 = vmatprep.subr.mxu0 0.0
  %1020 = vmatpush2.msra.mxu0 0.0
  %1021 = vmatprep.subr.mxu0 0.0
  %1022 = vmatpush2.msra.mxu0 0.0
  %1023 = vmatprep.subr.mxu0 0.0
  %1024 = vmatpush2.msra.mxu0 0.0
  %1025 = vmatprep.subr.mxu0 0.0
  %1026 = vmatpush2.msra.mxu0 0.0
  %1027 = vmatprep.mubr.f32.mxu0 0.0
  %1028 = vmatmul.mubr.f32.gmra.mxu0 %v961
  %v1029 = vpop.f32.mrf.mxu0
  %v1030 = vadd.f32 %v958, %v1029
  %v1031 = vpop.f32.mrf.mxu0
  %1032 = vdwg.mxu0
  %v1033 = vtanh.pop %v1030
  %v1034 = vld [vmem:[%s9] sm:$0xff]
  %v1035 = vld [vmem:[%s9 + $0x8] sm:$0xff]
  %v1036 = vld [vmem:[%s9 + $0x10] sm:$0xff]
  %v1037 = vld [vmem:[%s9 + $0x18] sm:$0xff]
  %v1038 = vld [vmem:[%s9 + $0x20] sm:$0xff]
  %v1039 = vld [vmem:[%s9 + $0x28] sm:$0xff]
  %v1040 = vld [vmem:[%s9 + $0x30] sm:$0xff]
  %v1041 = vld [vmem:[%s9 + $0x38] sm:$0xff]
  %v1042 = vld [vmem:[%s9 + $0x40] sm:$0xff]
  %v1043 = vld [vmem:[%s9 + $0x48] sm:$0xff]
  %v1044 = vld [vmem:[%s9 + $0x50] sm:$0xff]
  %v1045 = vld [vmem:[%s9 + $0x58] sm:$0xff]
  %v1046 = vld [vmem:[%s9 + $0x60] sm:$0xff]
  %v1047 = vld [vmem:[%s9 + $0x68] sm:$0xff]
  %v1048 = vld [vmem:[%s9 + $0x70] sm:$0xff]
  %v1049 = vld [vmem:[%s9 + $0x78] sm:$0xff]
  %v1050 = vld [vmem:[%s10] sm:$0x1]
  %v1052 = vlaneseq
  %v1053 = vshrl.u32 %v1052, 7
  %v1054 = vsub.s32 0, %v1053
  %v1055 = vrot.slane %v1050, %v1054
  %1057 = vmatprep.subr.mxu0 0.0
  %1058 = vmatpush1.msra.mxu0 %v1049
  %1059 = vmatprep.subr.mxu0 0.0
  %1060 = vmatpush1.msra.mxu0 %v1048
  %1061 = vmatprep.subr.mxu0 0.0
  %1062 = vmatpush1.msra.mxu0 %v1047
  %1063 = vmatprep.subr.mxu0 0.0
  %1064 = vmatpush1.msra.mxu0 %v1046
  %1065 = vmatprep.subr.mxu0 0.0
  %1066 = vmatpush1.msra.mxu0 %v1045
  %1067 = vmatprep.subr.mxu0 0.0
  %1068 = vmatpush1.msra.mxu0 %v1044
  %1069 = vmatprep.subr.mxu0 0.0
  %1070 = vmatpush1.msra.mxu0 %v1043
  %1071 = vmatprep.subr.mxu0 0.0
  %1072 = vmatpush1.msra.mxu0 %v1042
  %1073 = vmatprep.subr.mxu0 0.0
  %1074 = vmatpush1.msra.mxu0 %v1041
  %1075 = vmatprep.subr.mxu0 0.0
  %1076 = vmatpush1.msra.mxu0 %v1040
  %1077 = vmatprep.subr.mxu0 0.0
  %1078 = vmatpush1.msra.mxu0 %v1039
  %1079 = vmatprep.subr.mxu0 0.0
  %1080 = vmatpush1.msra.mxu0 %v1038
  %1081 = vmatprep.subr.mxu0 0.0
  %1082 = vmatpush1.msra.mxu0 %v1037
  %1083 = vmatprep.subr.mxu0 0.0
  %1084 = vmatpush1.msra.mxu0 %v1036
  %1085 = vmatprep.subr.mxu0 0.0
  %1086 = vmatpush1.msra.mxu0 %v1035
  %1087 = vmatprep.subr.mxu0 0.0
  %1088 = vmatpush1.msra.mxu0 %v1034
  %1089 = vmatprep.subr.mxu0 0.0
  %1090 = vmatpush2.msra.mxu0 0.0
  %1091 = vmatprep.subr.mxu0 0.0
  %1092 = vmatpush2.msra.mxu0 0.0
  %1093 = vmatprep.subr.mxu0 0.0
  %1094 = vmatpush2.msra.mxu0 0.0
  %1095 = vmatprep.subr.mxu0 0.0
  %1096 = vmatpush2.msra.mxu0 0.0
  %1097 = vmatprep.subr.mxu0 0.0
  %1098 = vmatpush2.msra.mxu0 0.0
  %1099 = vmatprep.subr.mxu0 0.0
  %1100 = vmatpush2.msra.mxu0 0.0
  %1101 = vmatprep.subr.mxu0 0.0
  %1102 = vmatpush2.msra.mxu0 0.0
  %1103 = vmatprep.subr.mxu0 0.0
  %1104 = vmatpush2.msra.mxu0 0.0
  %1105 = vmatprep.subr.mxu0 0.0
  %1106 = vmatpush2.msra.mxu0 0.0
  %1107 = vmatprep.subr.mxu0 0.0
  %1108 = vmatpush2.msra.mxu0 0.0
  %1109 = vmatprep.subr.mxu0 0.0
  %1110 = vmatpush2.msra.mxu0 0.0
  %1111 = vmatprep.subr.mxu0 0.0
  %1112 = vmatpush2.msra.mxu0 0.0
  %1113 = vmatprep.subr.mxu0 0.0
  %1114 = vmatpush2.msra.mxu0 0.0
  %1115 = vmatprep.subr.mxu0 0.0
  %1116 = vmatpush2.msra.mxu0 0.0
  %1117 = vmatprep.subr.mxu0 0.0
  %1118 = vmatpush2.msra.mxu0 0.0
  %1119 = vmatprep.subr.mxu0 0.0
  %1120 = vmatpush2.msra.mxu0 0.0
  %1121 = vmatprep.mubr.f32.mxu0 0.0
  %1122 = vmatmul.mubr.f32.gmra.mxu0 %v1033
  %v1123 = vpop.f32.mrf.mxu0
  %v1124 = vadd.f32 %v1055, %v1123
  %v1125 = vpop.f32.mrf.mxu0
  %1126 = vdwg.mxu0
  %v1127 = vlaneseq
  %v1128 = vand.u32 %v1127, 127
  %vm1129 = vcmp.lt.s32.totalorder %v1128, 7
  %v1130 = vsel %vm1129, %v1124, -inf
  %1131 = vmax.xlane.f32.xlu0 %v1130
  %v1132 = vpop.xlane.xlu0 %1131
  %v1133 = vsub.f32 %v1130, %v1132
  %v1134 = vmul.f32 %v1133, 1.442695
  %v1135 = vpow.pop %v1134
  %1136 = vadd.xlane.f32.xlu0 %v1135
  %v1137 = vpop.xlane.xlu0 %1136
  %v1138 = vlog2.pop %v1137
  %v1139 = vmul.f32 %v1138, 0.6931472
  %v1140 = vsub.f32 %v1133, %v1139
  %v1141 = vsel %vm1129, %v1140, 0.0
  %vm1142 = vcmp.eq.s32.totalorder %v1128, 7
  %1144 = vset.pattern.permute.xlu0 7
  %1145 = vperm.xlu0 %1144, %v1124
  %v1146 = vpop.permute.xlu0 %1145
  %v1148 = vsel %vm1142, %v1146, %v1141
  %1149 = vst [vmem:[%s11] sm:$0xff] %v1148
  // Predicated region
  $region46: #{ac_model_forward.1} parent=0 // pred_check
    _
  $region47: #{ac_model_forward.1} parent=0 // pred_check_branch
    %1151 = sbr.rel (0) target = $region49
  $region48: #{ac_model_forward.1} parent=0 // pred_region
    _
  $region49: #{ac_model_forward.1} parent=0 // pred_fallthru
    _
  // Predicated region
  $region50: #{ac_model_forward.1} parent=0 // pred_check
    _
  $region51: #{ac_model_forward.1} parent=0 // pred_check_branch
    %1153 = sbr.rel (0) target = $region53
  $region52: #{ac_model_forward.1} parent=0 // pred_region
    _
  $region53: #{ac_model_forward.1} parent=0 // pred_fallthru
    _

</llo_original>
